<compile_context>
chip_gen: v7x
topology: tpu7x:2x2x1
jax: 0.10.0
libtpu: 0.0.40
codegen_flags: <defaults>
</compile_context>

<pallas_src>
import functools
import math

import jax
import jax.numpy as jnp
from jax import lax
from jax.experimental import pallas as pl
from jax.experimental.pallas import tpu as pltpu

H_TOWER = 128   # hidden width of both towers (fixed by the module)
H_HEAD = 64     # hidden width of the scoring head (fixed by the module)
LANES = 128     # TPU lane width; batch tiles are multiples of this


def two_tower_kernel(ux_ref, ix_ref,
                     wu1_ref, bu1_ref, wu2_ref, bu2_ref,
                     wi1_ref, bi1_ref, wi2_ref, bi2_ref,
                     wf1u_ref, wf1i_ref, bf1_ref,
                     wf2_ref, bf2_ref,
                     o_ref):
    """Fused two-tower forward: towers -> (implicit concat) head -> sigmoid."""
    f32 = jnp.float32
    bf16 = jnp.bfloat16

    # ---- user tower: Linear -> ReLU -> (Dropout = identity) -> Linear ----
    hu = jnp.dot(ux_ref[...].astype(bf16), wu1_ref[...],
                 preferred_element_type=f32)
    hu = jnp.maximum(hu + bu1_ref[...], 0.0)
    ue = jnp.dot(hu.astype(bf16), wu2_ref[...],
                 preferred_element_type=f32) + bu2_ref[...]

    # ---- item tower: Linear -> ReLU -> (Dropout = identity) -> Linear ----
    hi = jnp.dot(ix_ref[...].astype(bf16), wi1_ref[...],
                 preferred_element_type=f32)
    hi = jnp.maximum(hi + bi1_ref[...], 0.0)
    ie = jnp.dot(hi.astype(bf16), wi2_ref[...],
                 preferred_element_type=f32) + bi2_ref[...]

    # ---- head: concat(ue, ie) @ Wf1 == ue @ Wf1[:E] + ie @ Wf1[E:] ----
    h = (jnp.dot(ue.astype(bf16), wf1u_ref[...], preferred_element_type=f32)
         + jnp.dot(ie.astype(bf16), wf1i_ref[...], preferred_element_type=f32)
         + bf1_ref[...])
    h = jnp.maximum(h, 0.0)
    # TODO(synk): nn.Dropout is identity in eval mode; training-mode dropout
    # (pltpu.prng_random_bits mask + 1/(1-p) scale) intentionally omitted.

    # ---- lane-dense score row: (1,64) x (block_b,64)^T -> (1, block_b) ----
    s = lax.dot_general(wf2_ref[...], h.astype(bf16),
                        dimension_numbers=(((1,), (1,)), ((), ())),
                        preferred_element_type=f32)
    s = s + bf2_ref[...]                      # (1,1) broadcast over lanes
    o_ref[...] = pl.reciprocal(1.0 + jnp.exp(-s), approx=True).astype(o_ref.dtype)


def _ceil_to(n, m):
    return ((n + m - 1) // m) * m


@functools.partial(jax.jit, static_argnames=("block_b",))
def two_tower_v2(user_x, item_x, params, *, block_b=2048):
    """user_x: [B, Du] f32, item_x: [B, Di] f32 -> sigmoid scores [B] f32."""
    B, Du = user_x.shape
    Bi, Di = item_x.shape
    assert B == Bi, "user/item batch mismatch"
    assert block_b % LANES == 0, "block_b must be a multiple of 128"
    E = params["wu2"].shape[1]

    # --- choose batch tile / step count (static at trace time) ---
    if B <= block_b:
        bb = _ceil_to(B, LANES)              # single step, minimal padding
        n_blocks = 1
    else:
        n_blocks = pl.cdiv(B, block_b)
        if n_blocks % 2:                      # even step count for v7x megacore
            n_blocks += 1
        bb = min(block_b, _ceil_to(pl.cdiv(B, n_blocks), LANES))
        n_blocks = pl.cdiv(B, bb)
        if n_blocks % 2:
            n_blocks += 1
    Bp = n_blocks * bb

    # --- pad batch (inputs stay f32; cast to bf16 happens inside the kernel) ---
    if Bp != B:
        user_x = jnp.pad(user_x, ((0, Bp - B), (0, 0)))
        item_x = jnp.pad(item_x, ((0, Bp - B), (0, 0)))

    # --- bf16 weights (f32 accumulation inside the kernel); biases stay f32 ---
    w = lambda name: params[name].astype(jnp.bfloat16)
    wu1, wu2 = w("wu1"), w("wu2")
    wi1, wi2 = w("wi1"), w("wi2")
    wf1u, wf1i = w("wf1")[:E, :], w("wf1")[E:, :]   # split: replaces torch.cat
    wf2 = w("wf2").T                                # (64,1) -> (1,64) row vector
    bu1, bu2 = params["bu1"], params["bu2"]
    bi1, bi2 = params["bi1"], params["bi2"]
    bf1, bf2 = params["bf1"], params["bf2"]         # bf2: (1,1) scalar

    # Constant-index weight specs: fetched once, stay VMEM-resident.
    full = lambda r, c: pl.BlockSpec((r, c), lambda i: (0, 0))

    per_row_flops = 2 * (Du * H_TOWER + H_TOWER * E + Di * H_TOWER
                         + H_TOWER * E + 2 * E * H_HEAD + H_HEAD * 1)
    weight_bytes = ((Du * H_TOWER + H_TOWER * E + Di * H_TOWER + H_TOWER * E
                     + 2 * E * H_HEAD + H_HEAD) * 2          # bf16 weights
                    + (2 * H_TOWER + 2 * E + H_HEAD + 1) * 4)  # f32 biases
    bytes_accessed = (Bp * (Du + Di) * 4      # f32 inputs
                      + weight_bytes
                      + Bp * 4)               # f32 lane-dense scores

    out = pl.pallas_call(
        two_tower_kernel,
        out_shape=jax.ShapeDtypeStruct((1, Bp), jnp.float32),
        grid_spec=pltpu.PrefetchScalarGridSpec(
            num_scalar_prefetch=0,
            grid=(n_blocks,),
            in_specs=[
                pl.BlockSpec((bb, Du), lambda i: (i, 0)),    # user tile (f32)
                pl.BlockSpec((bb, Di), lambda i: (i, 0)),    # item tile (f32)
                full(Du, H_TOWER), full(1, H_TOWER),         # user L1
                full(H_TOWER, E),  full(1, E),               # user L2
                full(Di, H_TOWER), full(1, H_TOWER),         # item L1
                full(H_TOWER, E),  full(1, E),               # item L2
                full(E, H_HEAD), full(E, H_HEAD), full(1, H_HEAD),  # head L1
                full(1, H_HEAD), full(1, 1),                        # head L2
            ],
            out_specs=pl.BlockSpec((1, bb), lambda i: (0, i)),
        ),
        compiler_params=pltpu.CompilerParams(
            dimension_semantics=("parallel",)),
        cost_estimate=pl.CostEstimate(
            flops=Bp * per_row_flops, transcendentals=2 * Bp,
            bytes_accessed=bytes_accessed),
    )(user_x, item_x,
      wu1, bu1, wu2, bu2,
      wi1, bi1, wi2, bi2,
      wf1u, wf1i, bf1,
      wf2, bf2)

    # take the real scores off the single lane-dense row; match torch .squeeze()
    return out[0, :B]


def init_params(key, user_input_size, item_input_size, embedding_size):
    """Deterministic synthetic params (PyTorch-like uniform fan-in init).

    Weights are stored (in, out) -- transpose of PyTorch's (out, in) -- so the
    kernel computes y = x @ W + b directly.
    """
    ks = jax.random.split(key, 12)

    def linear(kw, kb, fan_in, fan_out):
        bound = 1.0 / math.sqrt(fan_in)
        wgt = jax.random.uniform(kw, (fan_in, fan_out), jnp.float32, -bound, bound)
        bias = jax.random.uniform(kb, (1, fan_out), jnp.float32, -bound, bound)
        return wgt, bias

    wu1, bu1 = linear(ks[0], ks[1], user_input_size, H_TOWER)
    wu2, bu2 = linear(ks[2], ks[3], H_TOWER, embedding_size)
    wi1, bi1 = linear(ks[4], ks[5], item_input_size, H_TOWER)
    wi2, bi2 = linear(ks[6], ks[7], H_TOWER, embedding_size)
    wf1, bf1 = linear(ks[8], ks[9], 2 * embedding_size, H_HEAD)
    wf2, bf2 = linear(ks[10], ks[11], H_HEAD, 1)
    return {"wu1": wu1, "bu1": bu1, "wu2": wu2, "bu2": bu2,
            "wi1": wi1, "bi1": bi1, "wi2": wi2, "bi2": bi2,
            "wf1": wf1, "bf1": bf1, "wf2": wf2, "bf2": bf2}


def reference_forward(user_x, item_x, p):
    """Pure-JAX f32 reference mirroring the PyTorch forward (eval mode)."""
    ue = jnp.maximum(user_x @ p["wu1"] + p["bu1"], 0.0) @ p["wu2"] + p["bu2"]
    ie = jnp.maximum(item_x @ p["wi1"] + p["bi1"], 0.0) @ p["wi2"] + p["bi2"]
    c = jnp.concatenate([ue, ie], axis=1)
    h = jnp.maximum(c @ p["wf1"] + p["bf1"], 0.0)
    s = (h @ p["wf2"] + p["bf2"])[:, 0]
    return jax.nn.sigmoid(s)


if __name__ == "__main__":
    USER_INPUT_SIZE = 32
    ITEM_INPUT_SIZE = 48
    EMBEDDING_SIZE = 32
    BATCH = 200          # deliberately NOT a multiple of block_b (ragged path)
    BLOCK_B = 128        # -> padded to 256 rows, 2 grid steps (v7x megacore)

    key = jax.random.PRNGKey(0)
    k_u, k_i, k_p = jax.random.split(key, 3)

    user_x = jax.random.normal(k_u, (BATCH, USER_INPUT_SIZE), jnp.float32)
    item_x = jax.random.normal(k_i, (BATCH, ITEM_INPUT_SIZE), jnp.float32)
    params = init_params(k_p, USER_INPUT_SIZE, ITEM_INPUT_SIZE, EMBEDDING_SIZE)

    out = two_tower_v2(user_x, item_x, params, block_b=BLOCK_B)
    out = jax.block_until_ready(out)

    ref = reference_forward(user_x, item_x, params)
    assert out.shape == (BATCH,)
    # bf16 MXU operands with f32 accumulation -> looser tolerance vs f32 ref.
    assert jnp.allclose(out, ref, atol=3e-2, rtol=3e-2), "mismatch vs reference"

    print("KERNEL_OK")
</pallas_src>

<mosaic_0001>
module attributes {stable_mosaic.version = 11 : i64} {
  func.func @two_tower_kernel(%arg0: i32, %arg1: memref<128x32xf32, #tpu.memory_space<vmem>>, %arg2: memref<128x48xf32, #tpu.memory_space<vmem>>, %arg3: memref<32x128xbf16, #tpu.memory_space<vmem>>, %arg4: memref<1x128xf32, #tpu.memory_space<vmem>>, %arg5: memref<128x32xbf16, #tpu.memory_space<vmem>>, %arg6: memref<1x32xf32, #tpu.memory_space<vmem>>, %arg7: memref<48x128xbf16, #tpu.memory_space<vmem>>, %arg8: memref<1x128xf32, #tpu.memory_space<vmem>>, %arg9: memref<128x32xbf16, #tpu.memory_space<vmem>>, %arg10: memref<1x32xf32, #tpu.memory_space<vmem>>, %arg11: memref<32x64xbf16, #tpu.memory_space<vmem>>, %arg12: memref<32x64xbf16, #tpu.memory_space<vmem>>, %arg13: memref<1x64xf32, #tpu.memory_space<vmem>>, %arg14: memref<1x64xbf16, #tpu.memory_space<vmem>>, %arg15: memref<1x1xf32, #tpu.memory_space<vmem>>, %arg16: memref<1x128xf32, #tpu.memory_space<vmem>>) attributes {dimension_semantics = [#tpu.dimension_semantics<parallel>], iteration_bounds = array<i64: 2>, scalar_prefetch = 0 : i64, scratch_operands = 0 : i64, tpu.core_type = #tpu.core_type<tc>, window_params = [{transform_indices = @transform_0, window_bounds = array<i64: 128, 32>}, {transform_indices = @transform_1, window_bounds = array<i64: 128, 48>}, {pipeline_mode = #tpu.pipeline_mode<synchronous>, transform_indices = @transform_2, window_bounds = array<i64: 32, 128>}, {pipeline_mode = #tpu.pipeline_mode<synchronous>, transform_indices = @transform_3, window_bounds = array<i64: 1, 128>}, {pipeline_mode = #tpu.pipeline_mode<synchronous>, transform_indices = @transform_4, window_bounds = array<i64: 128, 32>}, {pipeline_mode = #tpu.pipeline_mode<synchronous>, transform_indices = @transform_5, window_bounds = array<i64: 1, 32>}, {pipeline_mode = #tpu.pipeline_mode<synchronous>, transform_indices = @transform_6, window_bounds = array<i64: 48, 128>}, {pipeline_mode = #tpu.pipeline_mode<synchronous>, transform_indices = @transform_7, window_bounds = array<i64: 1, 128>}, {pipeline_mode = #tpu.pipeline_mode<synchronous>, transform_indices = @transform_8, window_bounds = array<i64: 128, 32>}, {pipeline_mode = #tpu.pipeline_mode<synchronous>, transform_indices = @transform_9, window_bounds = array<i64: 1, 32>}, {pipeline_mode = #tpu.pipeline_mode<synchronous>, transform_indices = @transform_10, window_bounds = array<i64: 32, 64>}, {pipeline_mode = #tpu.pipeline_mode<synchronous>, transform_indices = @transform_11, window_bounds = array<i64: 32, 64>}, {pipeline_mode = #tpu.pipeline_mode<synchronous>, transform_indices = @transform_12, window_bounds = array<i64: 1, 64>}, {pipeline_mode = #tpu.pipeline_mode<synchronous>, transform_indices = @transform_13, window_bounds = array<i64: 1, 64>}, {pipeline_mode = #tpu.pipeline_mode<synchronous>, transform_indices = @transform_14, window_bounds = array<i64: 1, 1>}, {transform_indices = @transform_15, window_bounds = array<i64: 1, 128>}]} {
    %c0 = arith.constant 0 : index
    %c0_0 = arith.constant 0 : index
    %0 = vector.load %arg1[%c0, %c0_0] : memref<128x32xf32, #tpu.memory_space<vmem>>, vector<128x32xf32>
    %1 = arith.truncf %0 : vector<128x32xf32> to vector<128x32xbf16>
    %c0_1 = arith.constant 0 : index
    %c0_2 = arith.constant 0 : index
    %2 = vector.load %arg3[%c0_1, %c0_2] : memref<32x128xbf16, #tpu.memory_space<vmem>>, vector<32x128xbf16>
    %cst = arith.constant dense<0.000000e+00> : vector<128x128xf32>
    %3 = tpu.matmul %1, %2, %cst {dimension_numbers = #tpu.dot_dimension_numbers<[1], [0], [0], [1], [0, 0, 1, 1], [], []>} : vector<128x32xbf16>, vector<32x128xbf16>, vector<128x128xf32> -> vector<128x128xf32>
    %c0_3 = arith.constant 0 : index
    %c0_4 = arith.constant 0 : index
    %4 = vector.load %arg4[%c0_3, %c0_4] : memref<1x128xf32, #tpu.memory_space<vmem>>, vector<1x128xf32>
    %5 = vector.broadcast %4 : vector<1x128xf32> to vector<128x128xf32>
    %6 = arith.addf %3, %5 : vector<128x128xf32>
    %cst_5 = arith.constant 0.000000e+00 : f32
    %7 = vector.broadcast %cst_5 : f32 to vector<128x128xf32>
    %8 = arith.maximumf %6, %7 : vector<128x128xf32>
    %9 = arith.truncf %8 : vector<128x128xf32> to vector<128x128xbf16>
    %c0_6 = arith.constant 0 : index
    %c0_7 = arith.constant 0 : index
    %10 = vector.load %arg5[%c0_6, %c0_7] : memref<128x32xbf16, #tpu.memory_space<vmem>>, vector<128x32xbf16>
    %cst_8 = arith.constant dense<0.000000e+00> : vector<128x32xf32>
    %11 = tpu.matmul %9, %10, %cst_8 {dimension_numbers = #tpu.dot_dimension_numbers<[1], [0], [0], [1], [0, 0, 1, 1], [], []>} : vector<128x128xbf16>, vector<128x32xbf16>, vector<128x32xf32> -> vector<128x32xf32>
    %c0_9 = arith.constant 0 : index
    %c0_10 = arith.constant 0 : index
    %12 = vector.load %arg6[%c0_9, %c0_10] : memref<1x32xf32, #tpu.memory_space<vmem>>, vector<1x32xf32>
    %13 = vector.broadcast %12 : vector<1x32xf32> to vector<128x32xf32>
    %14 = arith.addf %11, %13 : vector<128x32xf32>
    %c0_11 = arith.constant 0 : index
    %c0_12 = arith.constant 0 : index
    %15 = vector.load %arg2[%c0_11, %c0_12] : memref<128x48xf32, #tpu.memory_space<vmem>>, vector<128x48xf32>
    %16 = arith.truncf %15 : vector<128x48xf32> to vector<128x48xbf16>
    %c0_13 = arith.constant 0 : index
    %c0_14 = arith.constant 0 : index
    %17 = vector.load %arg7[%c0_13, %c0_14] : memref<48x128xbf16, #tpu.memory_space<vmem>>, vector<48x128xbf16>
    %cst_15 = arith.constant dense<0.000000e+00> : vector<128x128xf32>
    %18 = tpu.matmul %16, %17, %cst_15 {dimension_numbers = #tpu.dot_dimension_numbers<[1], [0], [0], [1], [0, 0, 1, 1], [], []>} : vector<128x48xbf16>, vector<48x128xbf16>, vector<128x128xf32> -> vector<128x128xf32>
    %c0_16 = arith.constant 0 : index
    %c0_17 = arith.constant 0 : index
    %19 = vector.load %arg8[%c0_16, %c0_17] : memref<1x128xf32, #tpu.memory_space<vmem>>, vector<1x128xf32>
    %20 = vector.broadcast %19 : vector<1x128xf32> to vector<128x128xf32>
    %21 = arith.addf %18, %20 : vector<128x128xf32>
    %cst_18 = arith.constant 0.000000e+00 : f32
    %22 = vector.broadcast %cst_18 : f32 to vector<128x128xf32>
    %23 = arith.maximumf %21, %22 : vector<128x128xf32>
    %24 = arith.truncf %23 : vector<128x128xf32> to vector<128x128xbf16>
    %c0_19 = arith.constant 0 : index
    %c0_20 = arith.constant 0 : index
    %25 = vector.load %arg9[%c0_19, %c0_20] : memref<128x32xbf16, #tpu.memory_space<vmem>>, vector<128x32xbf16>
    %cst_21 = arith.constant dense<0.000000e+00> : vector<128x32xf32>
    %26 = tpu.matmul %24, %25, %cst_21 {dimension_numbers = #tpu.dot_dimension_numbers<[1], [0], [0], [1], [0, 0, 1, 1], [], []>} : vector<128x128xbf16>, vector<128x32xbf16>, vector<128x32xf32> -> vector<128x32xf32>
    %c0_22 = arith.constant 0 : index
    %c0_23 = arith.constant 0 : index
    %27 = vector.load %arg10[%c0_22, %c0_23] : memref<1x32xf32, #tpu.memory_space<vmem>>, vector<1x32xf32>
    %28 = vector.broadcast %27 : vector<1x32xf32> to vector<128x32xf32>
    %29 = arith.addf %26, %28 : vector<128x32xf32>
    %30 = arith.truncf %14 : vector<128x32xf32> to vector<128x32xbf16>
    %c0_24 = arith.constant 0 : index
    %c0_25 = arith.constant 0 : index
    %31 = vector.load %arg11[%c0_24, %c0_25] : memref<32x64xbf16, #tpu.memory_space<vmem>>, vector<32x64xbf16>
    %cst_26 = arith.constant dense<0.000000e+00> : vector<128x64xf32>
    %32 = tpu.matmul %30, %31, %cst_26 {dimension_numbers = #tpu.dot_dimension_numbers<[1], [0], [0], [1], [0, 0, 1, 1], [], []>} : vector<128x32xbf16>, vector<32x64xbf16>, vector<128x64xf32> -> vector<128x64xf32>
    %33 = arith.truncf %29 : vector<128x32xf32> to vector<128x32xbf16>
    %c0_27 = arith.constant 0 : index
    %c0_28 = arith.constant 0 : index
    %34 = vector.load %arg12[%c0_27, %c0_28] : memref<32x64xbf16, #tpu.memory_space<vmem>>, vector<32x64xbf16>
    %cst_29 = arith.constant dense<0.000000e+00> : vector<128x64xf32>
    %35 = tpu.matmul %33, %34, %cst_29 {dimension_numbers = #tpu.dot_dimension_numbers<[1], [0], [0], [1], [0, 0, 1, 1], [], []>} : vector<128x32xbf16>, vector<32x64xbf16>, vector<128x64xf32> -> vector<128x64xf32>
    %36 = arith.addf %32, %35 : vector<128x64xf32>
    %c0_30 = arith.constant 0 : index
    %c0_31 = arith.constant 0 : index
    %37 = vector.load %arg13[%c0_30, %c0_31] : memref<1x64xf32, #tpu.memory_space<vmem>>, vector<1x64xf32>
    %38 = vector.broadcast %37 : vector<1x64xf32> to vector<128x64xf32>
    %39 = arith.addf %36, %38 : vector<128x64xf32>
    %cst_32 = arith.constant 0.000000e+00 : f32
    %40 = vector.broadcast %cst_32 : f32 to vector<128x64xf32>
    %41 = arith.maximumf %39, %40 : vector<128x64xf32>
    %c0_33 = arith.constant 0 : index
    %c0_34 = arith.constant 0 : index
    %42 = vector.load %arg14[%c0_33, %c0_34] : memref<1x64xbf16, #tpu.memory_space<vmem>>, vector<1x64xbf16>
    %43 = arith.truncf %41 : vector<128x64xf32> to vector<128x64xbf16>
    %cst_35 = arith.constant dense<0.000000e+00> : vector<1x128xf32>
    %44 = tpu.matmul %42, %43, %cst_35 {dimension_numbers = #tpu.dot_dimension_numbers<[1], [1], [0], [0], [0, 0, 1, 0], [], []>} : vector<1x64xbf16>, vector<128x64xbf16>, vector<1x128xf32> -> vector<1x128xf32>
    %c0_36 = arith.constant 0 : index
    %c0_37 = arith.constant 0 : index
    %45 = vector.load %arg15[%c0_36, %c0_37] : memref<1x1xf32, #tpu.memory_space<vmem>>, vector<1x1xf32>
    %46 = vector.broadcast %45 : vector<1x1xf32> to vector<1x128xf32>
    %47 = arith.addf %44, %46 : vector<1x128xf32>
    %cst_38 = arith.constant 0.000000e+00 : f32
    %48 = vector.broadcast %cst_38 : f32 to vector<1x128xf32>
    %49 = arith.subf %48, %47 : vector<1x128xf32>
    %50 = math.exp %49 : vector<1x128xf32>
    %cst_39 = arith.constant 1.000000e+00 : f32
    %51 = vector.broadcast %cst_39 : f32 to vector<1x128xf32>
    %52 = arith.addf %51, %50 : vector<1x128xf32>
    %53 = tpu.reciprocal %52 {approx = true} : vector<1x128xf32> -> vector<1x128xf32>
    %c0_40 = arith.constant 0 : index
    %c0_41 = arith.constant 0 : index
    %54 = vector.load %arg16[%c0_40, %c0_41] : memref<1x128xf32, #tpu.memory_space<vmem>>, vector<1x128xf32>
    tpu.vector_store %arg16[%c0_40, %c0_41], %53 {strides = array<i32>} : memref<1x128xf32, #tpu.memory_space<vmem>>, vector<1x128xf32>,
    return
  }
  func.func @transform_0(%arg0: i32) -> (i32, i32) {
    %c0_i32 = arith.constant 0 : i32
    %c0_i32_0 = arith.constant 0 : i32
    return %arg0, %c0_i32 : i32, i32
  }
  func.func @transform_1(%arg0: i32) -> (i32, i32) {
    %c0_i32 = arith.constant 0 : i32
    %c0_i32_0 = arith.constant 0 : i32
    return %arg0, %c0_i32 : i32, i32
  }
  func.func @transform_2(%arg0: i32) -> (i32, i32) {
    %c0_i32 = arith.constant 0 : i32
    %c0_i32_0 = arith.constant 0 : i32
    %c0_i32_1 = arith.constant 0 : i32
    return %c0_i32, %c0_i32_0 : i32, i32
  }
  func.func @transform_3(%arg0: i32) -> (i32, i32) {
    %c0_i32 = arith.constant 0 : i32
    %c0_i32_0 = arith.constant 0 : i32
    %c0_i32_1 = arith.constant 0 : i32
    return %c0_i32, %c0_i32_0 : i32, i32
  }
  func.func @transform_4(%arg0: i32) -> (i32, i32) {
    %c0_i32 = arith.constant 0 : i32
    %c0_i32_0 = arith.constant 0 : i32
    %c0_i32_1 = arith.constant 0 : i32
    return %c0_i32, %c0_i32_0 : i32, i32
  }
  func.func @transform_5(%arg0: i32) -> (i32, i32) {
    %c0_i32 = arith.constant 0 : i32
    %c0_i32_0 = arith.constant 0 : i32
    %c0_i32_1 = arith.constant 0 : i32
    return %c0_i32, %c0_i32_0 : i32, i32
  }
  func.func @transform_6(%arg0: i32) -> (i32, i32) {
    %c0_i32 = arith.constant 0 : i32
    %c0_i32_0 = arith.constant 0 : i32
    %c0_i32_1 = arith.constant 0 : i32
    return %c0_i32, %c0_i32_0 : i32, i32
  }
  func.func @transform_7(%arg0: i32) -> (i32, i32) {
    %c0_i32 = arith.constant 0 : i32
    %c0_i32_0 = arith.constant 0 : i32
    %c0_i32_1 = arith.constant 0 : i32
    return %c0_i32, %c0_i32_0 : i32, i32
  }
  func.func @transform_8(%arg0: i32) -> (i32, i32) {
    %c0_i32 = arith.constant 0 : i32
    %c0_i32_0 = arith.constant 0 : i32
    %c0_i32_1 = arith.constant 0 : i32
    return %c0_i32, %c0_i32_0 : i32, i32
  }
  func.func @transform_9(%arg0: i32) -> (i32, i32) {
    %c0_i32 = arith.constant 0 : i32
    %c0_i32_0 = arith.constant 0 : i32
    %c0_i32_1 = arith.constant 0 : i32
    return %c0_i32, %c0_i32_0 : i32, i32
  }
  func.func @transform_10(%arg0: i32) -> (i32, i32) {
    %c0_i32 = arith.constant 0 : i32
    %c0_i32_0 = arith.constant 0 : i32
    %c0_i32_1 = arith.constant 0 : i32
    return %c0_i32, %c0_i32_0 : i32, i32
  }
  func.func @transform_11(%arg0: i32) -> (i32, i32) {
    %c0_i32 = arith.constant 0 : i32
    %c0_i32_0 = arith.constant 0 : i32
    %c0_i32_1 = arith.constant 0 : i32
    return %c0_i32, %c0_i32_0 : i32, i32
  }
  func.func @transform_12(%arg0: i32) -> (i32, i32) {
    %c0_i32 = arith.constant 0 : i32
    %c0_i32_0 = arith.constant 0 : i32
    %c0_i32_1 = arith.constant 0 : i32
    return %c0_i32, %c0_i32_0 : i32, i32
  }
  func.func @transform_13(%arg0: i32) -> (i32, i32) {
    %c0_i32 = arith.constant 0 : i32
    %c0_i32_0 = arith.constant 0 : i32
    %c0_i32_1 = arith.constant 0 : i32
    return %c0_i32, %c0_i32_0 : i32, i32
  }
  func.func @transform_14(%arg0: i32) -> (i32, i32) {
    %c0_i32 = arith.constant 0 : i32
    %c0_i32_0 = arith.constant 0 : i32
    %c0_i32_1 = arith.constant 0 : i32
    return %c0_i32, %c0_i32_0 : i32, i32
  }
  func.func @transform_15(%arg0: i32) -> (i32, i32) {
    %c0_i32 = arith.constant 0 : i32
    %c0_i32_0 = arith.constant 0 : i32
    return %c0_i32, %arg0 : i32, i32
  }
}

</mosaic_0001>

<llo_original>
// kernel: two_tower_v2.1
$region0: #{two_tower_v2.1}
  #allocation0 [shape = 'u32[]', space=smem, size = 0x4, offset = 0x4, fixed_abs, tag = 'smem constant byte address 0x4 - core index']
  #allocation1 [shape = 'u32[144,128]{1,0:T(1,128)}', space=vmem, size = 0x12000, scoped, tag = 'internal scratch']
  #allocation2 [shape = 'f32[1,1]{1,0:T(1,128)S(1)}', space=vmem, size = 0x200, scoped, tag = 'scoped memory for two_tower_v2.1']
  %s0 = inlined_call_operand.vmem [shape: f32[256,32], index: 0, kind: input, shape index: {}]
  %s1 = inlined_call_operand.vmem [shape: f32[256,48], index: 1, kind: input, shape index: {}]
  %s2 = inlined_call_operand.vmem [shape: bf16[32,128], index: 2, kind: input, shape index: {}]
  %s3 = inlined_call_operand.vmem [shape: f32[1,128], index: 3, kind: input, shape index: {}]
  %s4 = inlined_call_operand.vmem [shape: bf16[128,32], index: 4, kind: input, shape index: {}]
  %s5 = inlined_call_operand.vmem [shape: f32[1,32], index: 5, kind: input, shape index: {}]
  %s6 = inlined_call_operand.vmem [shape: bf16[48,128], index: 6, kind: input, shape index: {}]
  %s7 = inlined_call_operand.vmem [shape: f32[1,128], index: 7, kind: input, shape index: {}]
  %s8 = inlined_call_operand.vmem [shape: bf16[128,32], index: 8, kind: input, shape index: {}]
  %s9 = inlined_call_operand.vmem [shape: f32[1,32], index: 9, kind: input, shape index: {}]
  %s10 = inlined_call_operand.vmem [shape: bf16[32,64], index: 10, kind: input, shape index: {}]
  %s11 = inlined_call_operand.vmem [shape: bf16[32,64], index: 11, kind: input, shape index: {}]
  %s12 = inlined_call_operand.vmem [shape: f32[1,64], index: 12, kind: input, shape index: {}]
  %s13 = inlined_call_operand.vmem [shape: bf16[1,64], index: 13, kind: input, shape index: {}]
  %s14 = inlined_call_operand.<no memory space> [shape: f32[1,1], index: 14, kind: input, shape index: {}]
  %s15 = inlined_call_operand.hbm [shape: f32[1,256], index: 15, kind: output, shape index: {}]
  %s16 = sld [smem:[#allocation0]]
  $region93: #{two_tower_v2.1} parent=0
    _
  %s18 = ssub.s32 1, %s16
  %s19 = scalar_select 0, %s18, %s16
  %v20 = vstv %s14
  %21 = vst [vmem:[#allocation2] sm:$0x1] %v20
  $region1: #{two_tower_v2.1} parent=0
    #allocation3 [shape = 'u8[1024]{0}', space=vmem, size = 0x400, scoped, tag = 'output window, operand 0']
    #allocation4 [shape = 's32[2]{0}', space=sflag, size = 0x8, scoped, tag = 'scoped memory for two_tower_v2.1']
    %22 = vsyncpa [#allocation4], 0
    %s23 = scalar_lea.sflag [#allocation4], 1
    %24 = vsyncpa %s23, 0
    loop: start=0, step=1, limit=4
    $region2: #{two_tower_v2.1} parent=1 // loop_pre_header
      _
    $region3: #{two_tower_v2.1} parent=1 // loop_header
      %s26 = sphi 0, %s30
      %p27 = scmp.ge.s32.totalorder %s26, 4
      %s36 = sphi 0, %s38
      %s39 = sphi 0, %s36
      %s40 = sphi 0, %s39
      %s56 = sphi 0, %s40
      %s62 = sphi 0, %s64
      %s65 = sphi 0, %s62
      %s66 = sphi 0, %s65
      %s82 = sphi 0, %s66
      %s86 = sphi 0, %s86
      %s88 = sphi 0, %s86
      %s89 = sphi 0, %s88
      %s103 = sphi 0, %s89
      %s107 = sphi 0, %s107
      %s109 = sphi 0, %s107
      %s110 = sphi 0, %s109
      %s124 = sphi 0, %s110
      %s128 = sphi 0, %s128
      %s130 = sphi 0, %s128
      %s131 = sphi 0, %s130
      %s145 = sphi 0, %s131
      %s149 = sphi 0, %s149
      %s151 = sphi 0, %s149
      %s152 = sphi 0, %s151
      %s166 = sphi 0, %s152
      %s170 = sphi 0, %s170
      %s172 = sphi 0, %s170
      %s173 = sphi 0, %s172
      %s187 = sphi 0, %s173
      %s191 = sphi 0, %s191
      %s193 = sphi 0, %s191
      %s194 = sphi 0, %s193
      %s208 = sphi 0, %s194
      %s212 = sphi 0, %s212
      %s214 = sphi 0, %s212
      %s215 = sphi 0, %s214
      %s229 = sphi 0, %s215
      %s233 = sphi 0, %s233
      %s235 = sphi 0, %s233
      %s236 = sphi 0, %s235
      %s250 = sphi 0, %s236
      %s254 = sphi 0, %s254
      %s256 = sphi 0, %s254
      %s257 = sphi 0, %s256
      %s271 = sphi 0, %s257
      %s275 = sphi 0, %s275
      %s277 = sphi 0, %s275
      %s278 = sphi 0, %s277
      %s292 = sphi 0, %s278
      %s296 = sphi 0, %s296
      %s298 = sphi 0, %s296
      %s299 = sphi 0, %s298
      %s313 = sphi 0, %s299
      %s317 = sphi 0, %s317
      %s319 = sphi 0, %s317
      %s320 = sphi 0, %s319
      %s334 = sphi 0, %s320
      %s338 = sphi 0, %s338
      %s340 = sphi 0, %s338
      %s341 = sphi 0, %s340
      %s355 = sphi 0, %s341
      %s361 = sphi 0, %s363
      %s364 = sphi 0, %s361
      %s365 = sphi 0, %s364
      %s381 = sphi 0, %s365
    $region4: #{two_tower_v2.1} parent=1 // loop_header_branch
      %29 = sbr.rel (%p27) target = $region8
    $region5: #{two_tower_v2.1} parent=1 // loop_body
      %s31 = ssub.s32 %s26, 1
      %s32 = ssub.s32 %s26, 2
      %s33 = sadd.s32 %s26, 1
      %s34 = ssub.s32 %s26, %s33
      %p35 = scmp.eq.s32.totalorder %s34, 0
      %s37 = sadd.s32 %s36, 1
      %s38 = scalar_select %p35, %s36, %s37
      %p41 = pneg %p35
      %p42 = scmp.eq.s32.totalorder %s26, 1
      %p43 = por %p41, %p42
      %p44 = scmp.ne.s32.totalorder %s36, %s39
      %p45 = scmp.eq.s32.totalorder %s26, 0
      %p46 = por %p44, %p45
      %p47 = scmp.ne.s32.totalorder %s36, %s39
      %p48 = scmp.eq.s32.totalorder %s31, 1
      %p49 = por %p47, %p48
      %p50 = scmp.ne.s32.totalorder %s39, %s40
      %p51 = scmp.eq.s32.totalorder %s31, 0
      %p52 = por %p50, %p51
      %p53 = scmp.ne.s32.totalorder %s39, %s40
      %p54 = scmp.eq.s32.totalorder %s32, 1
      %p55 = por %p53, %p54
      %p57 = scmp.ne.s32.totalorder %s40, %s56
      %p58 = scmp.eq.s32.totalorder %s32, 0
      %p59 = por %p57, %p58
      %s60 = ssub.s32 %s26, %s33
      %p61 = scmp.eq.s32.totalorder %s60, 0
      %s63 = sadd.s32 %s62, 1
      %s64 = scalar_select %p61, %s62, %s63
      %p67 = pneg %p61
      %p68 = scmp.eq.s32.totalorder %s26, 1
      %p69 = por %p67, %p68
      %p70 = scmp.ne.s32.totalorder %s62, %s65
      %p71 = scmp.eq.s32.totalorder %s26, 0
      %p72 = por %p70, %p71
      %p73 = scmp.ne.s32.totalorder %s62, %s65
      %p74 = scmp.eq.s32.totalorder %s31, 1
      %p75 = por %p73, %p74
      %p76 = scmp.ne.s32.totalorder %s65, %s66
      %p77 = scmp.eq.s32.totalorder %s31, 0
      %p78 = por %p76, %p77
      %p79 = scmp.ne.s32.totalorder %s65, %s66
      %p80 = scmp.eq.s32.totalorder %s32, 1
      %p81 = por %p79, %p80
      %p83 = scmp.ne.s32.totalorder %s66, %s82
      %p84 = scmp.eq.s32.totalorder %s32, 0
      %p85 = por %p83, %p84
      %s87 = sadd.s32 %s86, 1
      %p90 = scmp.eq.s32.totalorder %s26, 1
      %p91 = scmp.ne.s32.totalorder %s86, %s88
      %p92 = scmp.eq.s32.totalorder %s26, 0
      %p93 = por %p91, %p92
      %p94 = scmp.ne.s32.totalorder %s86, %s88
      %p95 = scmp.eq.s32.totalorder %s31, 1
      %p96 = por %p94, %p95
      %p97 = scmp.ne.s32.totalorder %s88, %s89
      %p98 = scmp.eq.s32.totalorder %s31, 0
      %p99 = por %p97, %p98
      %p100 = scmp.ne.s32.totalorder %s88, %s89
      %p101 = scmp.eq.s32.totalorder %s32, 1
      %p102 = por %p100, %p101
      %p104 = scmp.ne.s32.totalorder %s89, %s103
      %p105 = scmp.eq.s32.totalorder %s32, 0
      %p106 = por %p104, %p105
      %s108 = sadd.s32 %s107, 1
      %p111 = scmp.eq.s32.totalorder %s26, 1
      %p112 = scmp.ne.s32.totalorder %s107, %s109
      %p113 = scmp.eq.s32.totalorder %s26, 0
      %p114 = por %p112, %p113
      %p115 = scmp.ne.s32.totalorder %s107, %s109
      %p116 = scmp.eq.s32.totalorder %s31, 1
      %p117 = por %p115, %p116
      %p118 = scmp.ne.s32.totalorder %s109, %s110
      %p119 = scmp.eq.s32.totalorder %s31, 0
      %p120 = por %p118, %p119
      %p121 = scmp.ne.s32.totalorder %s109, %s110
      %p122 = scmp.eq.s32.totalorder %s32, 1
      %p123 = por %p121, %p122
      %p125 = scmp.ne.s32.totalorder %s110, %s124
      %p126 = scmp.eq.s32.totalorder %s32, 0
      %p127 = por %p125, %p126
      %s129 = sadd.s32 %s128, 1
      %p132 = scmp.eq.s32.totalorder %s26, 1
      %p133 = scmp.ne.s32.totalorder %s128, %s130
      %p134 = scmp.eq.s32.totalorder %s26, 0
      %p135 = por %p133, %p134
      %p136 = scmp.ne.s32.totalorder %s128, %s130
      %p137 = scmp.eq.s32.totalorder %s31, 1
      %p138 = por %p136, %p137
      %p139 = scmp.ne.s32.totalorder %s130, %s131
      %p140 = scmp.eq.s32.totalorder %s31, 0
      %p141 = por %p139, %p140
      %p142 = scmp.ne.s32.totalorder %s130, %s131
      %p143 = scmp.eq.s32.totalorder %s32, 1
      %p144 = por %p142, %p143
      %p146 = scmp.ne.s32.totalorder %s131, %s145
      %p147 = scmp.eq.s32.totalorder %s32, 0
      %p148 = por %p146, %p147
      %s150 = sadd.s32 %s149, 1
      %p153 = scmp.eq.s32.totalorder %s26, 1
      %p154 = scmp.ne.s32.totalorder %s149, %s151
      %p155 = scmp.eq.s32.totalorder %s26, 0
      %p156 = por %p154, %p155
      %p157 = scmp.ne.s32.totalorder %s149, %s151
      %p158 = scmp.eq.s32.totalorder %s31, 1
      %p159 = por %p157, %p158
      %p160 = scmp.ne.s32.totalorder %s151, %s152
      %p161 = scmp.eq.s32.totalorder %s31, 0
      %p162 = por %p160, %p161
      %p163 = scmp.ne.s32.totalorder %s151, %s152
      %p164 = scmp.eq.s32.totalorder %s32, 1
      %p165 = por %p163, %p164
      %p167 = scmp.ne.s32.totalorder %s152, %s166
      %p168 = scmp.eq.s32.totalorder %s32, 0
      %p169 = por %p167, %p168
      %s171 = sadd.s32 %s170, 1
      %p174 = scmp.eq.s32.totalorder %s26, 1
      %p175 = scmp.ne.s32.totalorder %s170, %s172
      %p176 = scmp.eq.s32.totalorder %s26, 0
      %p177 = por %p175, %p176
      %p178 = scmp.ne.s32.totalorder %s170, %s172
      %p179 = scmp.eq.s32.totalorder %s31, 1
      %p180 = por %p178, %p179
      %p181 = scmp.ne.s32.totalorder %s172, %s173
      %p182 = scmp.eq.s32.totalorder %s31, 0
      %p183 = por %p181, %p182
      %p184 = scmp.ne.s32.totalorder %s172, %s173
      %p185 = scmp.eq.s32.totalorder %s32, 1
      %p186 = por %p184, %p185
      %p188 = scmp.ne.s32.totalorder %s173, %s187
      %p189 = scmp.eq.s32.totalorder %s32, 0
      %p190 = por %p188, %p189
      %s192 = sadd.s32 %s191, 1
      %p195 = scmp.eq.s32.totalorder %s26, 1
      %p196 = scmp.ne.s32.totalorder %s191, %s193
      %p197 = scmp.eq.s32.totalorder %s26, 0
      %p198 = por %p196, %p197
      %p199 = scmp.ne.s32.totalorder %s191, %s193
      %p200 = scmp.eq.s32.totalorder %s31, 1
      %p201 = por %p199, %p200
      %p202 = scmp.ne.s32.totalorder %s193, %s194
      %p203 = scmp.eq.s32.totalorder %s31, 0
      %p204 = por %p202, %p203
      %p205 = scmp.ne.s32.totalorder %s193, %s194
      %p206 = scmp.eq.s32.totalorder %s32, 1
      %p207 = por %p205, %p206
      %p209 = scmp.ne.s32.totalorder %s194, %s208
      %p210 = scmp.eq.s32.totalorder %s32, 0
      %p211 = por %p209, %p210
      %s213 = sadd.s32 %s212, 1
      %p216 = scmp.eq.s32.totalorder %s26, 1
      %p217 = scmp.ne.s32.totalorder %s212, %s214
      %p218 = scmp.eq.s32.totalorder %s26, 0
      %p219 = por %p217, %p218
      %p220 = scmp.ne.s32.totalorder %s212, %s214
      %p221 = scmp.eq.s32.totalorder %s31, 1
      %p222 = por %p220, %p221
      %p223 = scmp.ne.s32.totalorder %s214, %s215
      %p224 = scmp.eq.s32.totalorder %s31, 0
      %p225 = por %p223, %p224
      %p226 = scmp.ne.s32.totalorder %s214, %s215
      %p227 = scmp.eq.s32.totalorder %s32, 1
      %p228 = por %p226, %p227
      %p230 = scmp.ne.s32.totalorder %s215, %s229
      %p231 = scmp.eq.s32.totalorder %s32, 0
      %p232 = por %p230, %p231
      %s234 = sadd.s32 %s233, 1
      %p237 = scmp.eq.s32.totalorder %s26, 1
      %p238 = scmp.ne.s32.totalorder %s233, %s235
      %p239 = scmp.eq.s32.totalorder %s26, 0
      %p240 = por %p238, %p239
      %p241 = scmp.ne.s32.totalorder %s233, %s235
      %p242 = scmp.eq.s32.totalorder %s31, 1
      %p243 = por %p241, %p242
      %p244 = scmp.ne.s32.totalorder %s235, %s236
      %p245 = scmp.eq.s32.totalorder %s31, 0
      %p246 = por %p244, %p245
      %p247 = scmp.ne.s32.totalorder %s235, %s236
      %p248 = scmp.eq.s32.totalorder %s32, 1
      %p249 = por %p247, %p248
      %p251 = scmp.ne.s32.totalorder %s236, %s250
      %p252 = scmp.eq.s32.totalorder %s32, 0
      %p253 = por %p251, %p252
      %s255 = sadd.s32 %s254, 1
      %p258 = scmp.eq.s32.totalorder %s26, 1
      %p259 = scmp.ne.s32.totalorder %s254, %s256
      %p260 = scmp.eq.s32.totalorder %s26, 0
      %p261 = por %p259, %p260
      %p262 = scmp.ne.s32.totalorder %s254, %s256
      %p263 = scmp.eq.s32.totalorder %s31, 1
      %p264 = por %p262, %p263
      %p265 = scmp.ne.s32.totalorder %s256, %s257
      %p266 = scmp.eq.s32.totalorder %s31, 0
      %p267 = por %p265, %p266
      %p268 = scmp.ne.s32.totalorder %s256, %s257
      %p269 = scmp.eq.s32.totalorder %s32, 1
      %p270 = por %p268, %p269
      %p272 = scmp.ne.s32.totalorder %s257, %s271
      %p273 = scmp.eq.s32.totalorder %s32, 0
      %p274 = por %p272, %p273
      %s276 = sadd.s32 %s275, 1
      %p279 = scmp.eq.s32.totalorder %s26, 1
      %p280 = scmp.ne.s32.totalorder %s275, %s277
      %p281 = scmp.eq.s32.totalorder %s26, 0
      %p282 = por %p280, %p281
      %p283 = scmp.ne.s32.totalorder %s275, %s277
      %p284 = scmp.eq.s32.totalorder %s31, 1
      %p285 = por %p283, %p284
      %p286 = scmp.ne.s32.totalorder %s277, %s278
      %p287 = scmp.eq.s32.totalorder %s31, 0
      %p288 = por %p286, %p287
      %p289 = scmp.ne.s32.totalorder %s277, %s278
      %p290 = scmp.eq.s32.totalorder %s32, 1
      %p291 = por %p289, %p290
      %p293 = scmp.ne.s32.totalorder %s278, %s292
      %p294 = scmp.eq.s32.totalorder %s32, 0
      %p295 = por %p293, %p294
      %s297 = sadd.s32 %s296, 1
      %p300 = scmp.eq.s32.totalorder %s26, 1
      %p301 = scmp.ne.s32.totalorder %s296, %s298
      %p302 = scmp.eq.s32.totalorder %s26, 0
      %p303 = por %p301, %p302
      %p304 = scmp.ne.s32.totalorder %s296, %s298
      %p305 = scmp.eq.s32.totalorder %s31, 1
      %p306 = por %p304, %p305
      %p307 = scmp.ne.s32.totalorder %s298, %s299
      %p308 = scmp.eq.s32.totalorder %s31, 0
      %p309 = por %p307, %p308
      %p310 = scmp.ne.s32.totalorder %s298, %s299
      %p311 = scmp.eq.s32.totalorder %s32, 1
      %p312 = por %p310, %p311
      %p314 = scmp.ne.s32.totalorder %s299, %s313
      %p315 = scmp.eq.s32.totalorder %s32, 0
      %p316 = por %p314, %p315
      %s318 = sadd.s32 %s317, 1
      %p321 = scmp.eq.s32.totalorder %s26, 1
      %p322 = scmp.ne.s32.totalorder %s317, %s319
      %p323 = scmp.eq.s32.totalorder %s26, 0
      %p324 = por %p322, %p323
      %p325 = scmp.ne.s32.totalorder %s317, %s319
      %p326 = scmp.eq.s32.totalorder %s31, 1
      %p327 = por %p325, %p326
      %p328 = scmp.ne.s32.totalorder %s319, %s320
      %p329 = scmp.eq.s32.totalorder %s31, 0
      %p330 = por %p328, %p329
      %p331 = scmp.ne.s32.totalorder %s319, %s320
      %p332 = scmp.eq.s32.totalorder %s32, 1
      %p333 = por %p331, %p332
      %p335 = scmp.ne.s32.totalorder %s320, %s334
      %p336 = scmp.eq.s32.totalorder %s32, 0
      %p337 = por %p335, %p336
      %s339 = sadd.s32 %s338, 1
      %p342 = scmp.eq.s32.totalorder %s26, 1
      %p343 = scmp.ne.s32.totalorder %s338, %s340
      %p344 = scmp.eq.s32.totalorder %s26, 0
      %p345 = por %p343, %p344
      %p346 = scmp.ne.s32.totalorder %s338, %s340
      %p347 = scmp.eq.s32.totalorder %s31, 1
      %p348 = por %p346, %p347
      %p349 = scmp.ne.s32.totalorder %s340, %s341
      %p350 = scmp.eq.s32.totalorder %s31, 0
      %p351 = por %p349, %p350
      %p352 = scmp.ne.s32.totalorder %s340, %s341
      %p353 = scmp.eq.s32.totalorder %s32, 1
      %p354 = por %p352, %p353
      %p356 = scmp.ne.s32.totalorder %s341, %s355
      %p357 = scmp.eq.s32.totalorder %s32, 0
      %p358 = por %p356, %p357
      %s359 = ssub.s32 %s26, %s33
      %p360 = scmp.eq.s32.totalorder %s359, 0
      %s362 = sadd.s32 %s361, 1
      %s363 = scalar_select %p360, %s361, %s362
      %p366 = pneg %p360
      %p367 = scmp.eq.s32.totalorder %s26, 1
      %p368 = por %p366, %p367
      %p369 = scmp.ne.s32.totalorder %s361, %s364
      %p370 = scmp.eq.s32.totalorder %s26, 0
      %p371 = por %p369, %p370
      %p372 = scmp.ne.s32.totalorder %s361, %s364
      %p373 = scmp.eq.s32.totalorder %s31, 1
      %p374 = por %p372, %p373
      %p375 = scmp.ne.s32.totalorder %s364, %s365
      %p376 = scmp.eq.s32.totalorder %s31, 0
      %p377 = por %p375, %p376
      %p378 = scmp.ne.s32.totalorder %s364, %s365
      %p379 = scmp.eq.s32.totalorder %s32, 1
      %p380 = por %p378, %p379
      %p382 = scmp.ne.s32.totalorder %s365, %s381
      %p383 = scmp.eq.s32.totalorder %s32, 0
      %p384 = por %p382, %p383
      %p385 = scmp.le.s32.totalorder 1, %s26
      %p386 = scmp.lt.s32.totalorder %s26, 3
      %p387 = pnand %p385, %p386
      %p388 = pneg %p387
      // Predicated region
      $region9: #{two_tower_v2.1} parent=5 // pred_check
        _
      $region10: #{two_tower_v2.1} parent=5 // pred_check_branch
        %390 = sbr.rel (%p387) target = $region12
      $region11: #{two_tower_v2.1} parent=5 // pred_region
        %s391 = ssub.s32 %s26, 1
        // Predicated region
        $region13: #{two_tower_v2.1} parent=11 // pred_check
          %p392 = pneg %p99
        $region14: #{two_tower_v2.1} parent=11 // pred_check_branch
          %394 = sbr.rel (%p392) target = $region16
        $region15: #{two_tower_v2.1} parent=11 // pred_region
          _
        $region16: #{two_tower_v2.1} parent=11 // pred_fallthru
          _
        // Predicated region
        $region17: #{two_tower_v2.1} parent=11 // pred_check
          %p395 = pneg %p120
        $region18: #{two_tower_v2.1} parent=11 // pred_check_branch
          %397 = sbr.rel (%p395) target = $region20
        $region19: #{two_tower_v2.1} parent=11 // pred_region
          _
        $region20: #{two_tower_v2.1} parent=11 // pred_fallthru
          _
        // Predicated region
        $region21: #{two_tower_v2.1} parent=11 // pred_check
          %p398 = pneg %p141
        $region22: #{two_tower_v2.1} parent=11 // pred_check_branch
          %400 = sbr.rel (%p398) target = $region24
        $region23: #{two_tower_v2.1} parent=11 // pred_region
          _
        $region24: #{two_tower_v2.1} parent=11 // pred_fallthru
          _
        // Predicated region
        $region25: #{two_tower_v2.1} parent=11 // pred_check
          %p401 = pneg %p162
        $region26: #{two_tower_v2.1} parent=11 // pred_check_branch
          %403 = sbr.rel (%p401) target = $region28
        $region27: #{two_tower_v2.1} parent=11 // pred_region
          _
        $region28: #{two_tower_v2.1} parent=11 // pred_fallthru
          _
        // Predicated region
        $region29: #{two_tower_v2.1} parent=11 // pred_check
          %p404 = pneg %p183
        $region30: #{two_tower_v2.1} parent=11 // pred_check_branch
          %406 = sbr.rel (%p404) target = $region32
        $region31: #{two_tower_v2.1} parent=11 // pred_region
          _
        $region32: #{two_tower_v2.1} parent=11 // pred_fallthru
          _
        // Predicated region
        $region33: #{two_tower_v2.1} parent=11 // pred_check
          %p407 = pneg %p204
        $region34: #{two_tower_v2.1} parent=11 // pred_check_branch
          %409 = sbr.rel (%p407) target = $region36
        $region35: #{two_tower_v2.1} parent=11 // pred_region
          _
        $region36: #{two_tower_v2.1} parent=11 // pred_fallthru
          _
        // Predicated region
        $region37: #{two_tower_v2.1} parent=11 // pred_check
          %p410 = pneg %p225
        $region38: #{two_tower_v2.1} parent=11 // pred_check_branch
          %412 = sbr.rel (%p410) target = $region40
        $region39: #{two_tower_v2.1} parent=11 // pred_region
          _
        $region40: #{two_tower_v2.1} parent=11 // pred_fallthru
          _
        // Predicated region
        $region41: #{two_tower_v2.1} parent=11 // pred_check
          %p413 = pneg %p246
        $region42: #{two_tower_v2.1} parent=11 // pred_check_branch
          %415 = sbr.rel (%p413) target = $region44
        $region43: #{two_tower_v2.1} parent=11 // pred_region
          _
        $region44: #{two_tower_v2.1} parent=11 // pred_fallthru
          _
        // Predicated region
        $region45: #{two_tower_v2.1} parent=11 // pred_check
          %p416 = pneg %p267
        $region46: #{two_tower_v2.1} parent=11 // pred_check_branch
          %418 = sbr.rel (%p416) target = $region48
        $region47: #{two_tower_v2.1} parent=11 // pred_region
          _
        $region48: #{two_tower_v2.1} parent=11 // pred_fallthru
          _
        // Predicated region
        $region49: #{two_tower_v2.1} parent=11 // pred_check
          %p419 = pneg %p288
        $region50: #{two_tower_v2.1} parent=11 // pred_check_branch
          %421 = sbr.rel (%p419) target = $region52
        $region51: #{two_tower_v2.1} parent=11 // pred_region
          _
        $region52: #{two_tower_v2.1} parent=11 // pred_fallthru
          _
        // Predicated region
        $region53: #{two_tower_v2.1} parent=11 // pred_check
          %p422 = pneg %p309
        $region54: #{two_tower_v2.1} parent=11 // pred_check_branch
          %424 = sbr.rel (%p422) target = $region56
        $region55: #{two_tower_v2.1} parent=11 // pred_region
          _
        $region56: #{two_tower_v2.1} parent=11 // pred_fallthru
          _
        // Predicated region
        $region57: #{two_tower_v2.1} parent=11 // pred_check
          %p425 = pneg %p330
        $region58: #{two_tower_v2.1} parent=11 // pred_check_branch
          %427 = sbr.rel (%p425) target = $region60
        $region59: #{two_tower_v2.1} parent=11 // pred_region
          _
        $region60: #{two_tower_v2.1} parent=11 // pred_fallthru
          _
        // Predicated region
        $region61: #{two_tower_v2.1} parent=11 // pred_check
          %p428 = pneg %p351
        $region62: #{two_tower_v2.1} parent=11 // pred_check_branch
          %430 = sbr.rel (%p428) target = $region64
        $region63: #{two_tower_v2.1} parent=11 // pred_region
          _
        $region64: #{two_tower_v2.1} parent=11 // pred_fallthru
          _
      $region12: #{two_tower_v2.1} parent=5 // pred_fallthru
        _
      %p431 = scmp.lt.s32.totalorder %s26, 2
      // Predicated region
      $region65: #{two_tower_v2.1} parent=5 // pred_check
        %p432 = pneg %p431
      $region66: #{two_tower_v2.1} parent=5 // pred_check_branch
        %434 = sbr.rel (%p432) target = $region68
      $region67: #{two_tower_v2.1} parent=5 // pred_region
        // Predicated region
        $region69: #{two_tower_v2.1} parent=67 // pred_check
          %p435 = pneg %p46
        $region70: #{two_tower_v2.1} parent=67 // pred_check_branch
          %437 = sbr.rel (%p435) target = $region72
        $region71: #{two_tower_v2.1} parent=67 // pred_region
          %s438 = smul.u32 16, %s26
          %p439 = scmp.lt.s32.totalorder %s438, 31
          %s440 = scalar_select %p439, %s438, 31
          %s441 = smul.addr %s440, 8
          %s442 = scalar_lea.vmem %s0, %s441
          %s443 = smul.u32 16, %s26
        $region72: #{two_tower_v2.1} parent=67 // pred_fallthru
          _
        // Predicated region
        $region73: #{two_tower_v2.1} parent=67 // pred_check
          %p444 = pneg %p72
        $region74: #{two_tower_v2.1} parent=67 // pred_check_branch
          %446 = sbr.rel (%p444) target = $region76
        $region75: #{two_tower_v2.1} parent=67 // pred_region
          %s447 = smul.u32 16, %s26
          %p448 = scmp.lt.s32.totalorder %s447, 31
          %s449 = scalar_select %p448, %s447, 31
          %s450 = smul.addr %s449, 8
          %s451 = scalar_lea.vmem %s1, %s450
          %s452 = smul.u32 16, %s26
        $region76: #{two_tower_v2.1} parent=67 // pred_fallthru
          _
      $region68: #{two_tower_v2.1} parent=5 // pred_fallthru
        _
      %p453 = scmp.le.s32.totalorder 1, %s26
      %p454 = scmp.lt.s32.totalorder %s26, 3
      %p455 = pnand %p453, %p454
      %p456 = pneg %p455
      // Predicated region
      $region77: #{two_tower_v2.1} parent=5 // pred_check
        _
      $region78: #{two_tower_v2.1} parent=5 // pred_check_branch
        %458 = sbr.rel (%p455) target = $region80
      $region79: #{two_tower_v2.1} parent=5 // pred_region
        %s459 = ssub.s32 %s26, 1
        %s460 = smul.u32 16, %s31
        %p461 = scmp.lt.s32.totalorder %s460, 31
        %s462 = scalar_select %p461, %s460, 31
        %s463 = smul.addr %s462, 8
        %s464 = scalar_lea.vmem %s0, %s463
        %p465 = pneg %p52
        %p466 = pneg %p49
        %s467 = smul.u32 16, %s31
        %p468 = scmp.lt.s32.totalorder %s467, 31
        %s469 = scalar_select %p468, %s467, 31
        %s470 = smul.addr %s469, 8
        %s471 = scalar_lea.vmem %s1, %s470
        %p472 = pneg %p78
        %p473 = pneg %p75
        %p474 = pneg %p99
        %p475 = pneg %p96
        %p476 = pneg %p120
        %p477 = pneg %p117
        %p478 = pneg %p141
        %p479 = pneg %p138
        %p480 = pneg %p162
        %p481 = pneg %p159
        %p482 = pneg %p183
        %p483 = pneg %p180
        %p484 = pneg %p204
        %p485 = pneg %p201
        %p486 = pneg %p225
        %p487 = pneg %p222
        %p488 = pneg %p246
        %p489 = pneg %p243
        %p490 = pneg %p267
        %p491 = pneg %p264
        %p492 = pneg %p288
        %p493 = pneg %p285
        %p494 = pneg %p309
        %p495 = pneg %p306
        %p496 = pneg %p330
        %p497 = pneg %p327
        %p498 = pneg %p351
        %p499 = pneg %p348
        %p500 = pneg %p377
        %p501 = pneg %p374
        %s502 = sand.u32 %s364, 1
        %s503 = scalar_lea.sflag [#allocation4], %s502
        %s504 = sand.u32 %s364, 1
        %s505 = scalar_lea.vmem [#allocation3], %s504
        %s506 = smul.u32 16, %s31
        %p507 = scmp.lt.s32.totalorder %s506, 31
        %s508 = scalar_select %p507, %s506, 31
        %s509 = smul.addr %s508, 8
        %s510 = scalar_lea.vmem %s0, %s509
        %s511 = smul.u32 16, %s31
        %s512 = smul.u32 16, %s31
        %p513 = scmp.lt.s32.totalorder %s512, 31
        %s514 = scalar_select %p513, %s512, 31
        %s515 = smul.addr %s514, 8
        %s516 = scalar_lea.vmem %s1, %s515
        %s517 = smul.u32 16, %s31
        %v519 = vld [vmem:[%s510] sm:$0xff]
        %v520 = vld [vmem:[%s510 + $0x8] sm:$0xff]
        %v521 = vld [vmem:[%s510 + $0x10] sm:$0xff]
        %v522 = vld [vmem:[%s510 + $0x18] sm:$0xff]
        %v523 = vld [vmem:[%s510 + $0x20] sm:$0xff]
        %v524 = vld [vmem:[%s510 + $0x28] sm:$0xff]
        %v525 = vld [vmem:[%s510 + $0x30] sm:$0xff]
        %v526 = vld [vmem:[%s510 + $0x38] sm:$0xff]
        %v527 = vld [vmem:[%s510 + $0x40] sm:$0xff]
        %v528 = vld [vmem:[%s510 + $0x48] sm:$0xff]
        %v529 = vld [vmem:[%s510 + $0x50] sm:$0xff]
        %v530 = vld [vmem:[%s510 + $0x58] sm:$0xff]
        %v531 = vld [vmem:[%s510 + $0x60] sm:$0xff]
        %v532 = vld [vmem:[%s510 + $0x68] sm:$0xff]
        %v533 = vld [vmem:[%s510 + $0x70] sm:$0xff]
        %v534 = vld [vmem:[%s510 + $0x78] sm:$0xff]
        %v535 = vpack.c.bf16 %v520, %v519
        %v536 = vpack.c.bf16 %v522, %v521
        %v537 = vpack.c.bf16 %v524, %v523
        %v538 = vpack.c.bf16 %v526, %v525
        %v539 = vpack.c.bf16 %v528, %v527
        %v540 = vpack.c.bf16 %v530, %v529
        %v541 = vpack.c.bf16 %v532, %v531
        %v542 = vpack.c.bf16 %v534, %v533
        %v543 = vld [vmem:[%s2] sm:$0xf]
        %v544 = vld [vmem:[%s2 + $0x4] sm:$0xf]
        %v545 = vld [vmem:[%s2 + $0x8] sm:$0xf]
        %v546 = vld [vmem:[%s2 + $0xc] sm:$0xf]
        %v547 = vld [vmem:[%s3] sm:$0x1]
        %v549 = vlaneseq
        %v550 = vshrl.u32 %v549, 7
        %v551 = vsub.s32 0, %v550
        %v552 = vrot.slane %v547, %v551
        %v558 = vunpack.c.l.b16 %v543
        %v559 = vunpack.c.l.b16 %v544
        %v560 = vunpack.c.l.b16 %v545
        %v561 = vunpack.c.l.b16 %v546
        %v562 = vpack.c.b16 %v559, %v558
        %v563 = vpack.c.b16 %v561, %v560
        %vm566 = vcmask 261120
        %v568 = vsel %vm566, %v535, 0
        %v571 = vsel %vm566, %v536, 0
        %v574 = vsel %vm566, %v537, 0
        %v577 = vsel %vm566, %v538, 0
        %v580 = vsel %vm566, %v539, 0
        %v583 = vsel %vm566, %v540, 0
        %v586 = vsel %vm566, %v541, 0
        %v589 = vsel %vm566, %v542, 0
        %591 = vmatprep.subr.bf16.mxu0 0
        %592 = vmatpush1.bf16.msra.mxu0 %v562
        %593 = vmatprep.subr.bf16.mxu0 0
        %594 = vmatpush1.bf16.msra.mxu0 %v563
        %595 = vmatprep.subr.bf16.mxu0 0
        %596 = vmatpush1.bf16.msra.mxu0 0
        %597 = vmatprep.subr.bf16.mxu0 0
        %598 = vmatpush1.bf16.msra.mxu0 0
        %599 = vmatprep.subr.bf16.mxu0 0
        %600 = vmatpush1.bf16.msra.mxu0 0
        %601 = vmatprep.subr.bf16.mxu0 0
        %602 = vmatpush1.bf16.msra.mxu0 0
        %603 = vmatprep.subr.bf16.mxu0 0
        %604 = vmatpush1.bf16.msra.mxu0 0
        %605 = vmatprep.subr.bf16.mxu0 0
        %606 = vmatpush1.bf16.msra.mxu0 0
        %607 = vmatprep.subr.bf16.mxu0 0
        %608 = vmatpush1.bf16.msra.mxu0 0
        %609 = vmatprep.subr.bf16.mxu0 0
        %610 = vmatpush1.bf16.msra.mxu0 0
        %611 = vmatprep.subr.bf16.mxu0 0
        %612 = vmatpush1.bf16.msra.mxu0 0
        %613 = vmatprep.subr.bf16.mxu0 0
        %614 = vmatpush1.bf16.msra.mxu0 0
        %615 = vmatprep.subr.bf16.mxu0 0
        %616 = vmatpush1.bf16.msra.mxu0 0
        %617 = vmatprep.subr.bf16.mxu0 0
        %618 = vmatpush1.bf16.msra.mxu0 0
        %619 = vmatprep.subr.bf16.mxu0 0
        %620 = vmatpush1.bf16.msra.mxu0 0
        %621 = vmatprep.subr.bf16.mxu0 0
        %622 = vmatpush1.bf16.msra.mxu0 0
        %623 = vmatprep.mubr.bf16.mxu0 0
        %624 = vmatmul.mubr.bf16.gmra.mrb[0].mxu0 %v568
        %v625 = vpop.f32.mrb[0].mxu0
        %v626 = vadd.f32 %v552, %v625
        %v627 = vpop.f32.mrb[0].mxu0
        %v628 = vpop.f32.mrb[0].mxu0
        %v629 = vadd.f32 %v552, %v628
        %v630 = vpop.f32.mrb[0].mxu0
        %631 = vmatprep.mubr.bf16.mxu0 0
        %632 = vmatmul.mubr.bf16.gmra.mrb[0].mxu0 %v571
        %v633 = vpop.f32.mrb[0].mxu0
        %v634 = vadd.f32 %v552, %v633
        %v635 = vpop.f32.mrb[0].mxu0
        %v636 = vpop.f32.mrb[0].mxu0
        %v637 = vadd.f32 %v552, %v636
        %v638 = vpop.f32.mrb[0].mxu0
        %639 = vmatprep.mubr.bf16.mxu0 0
        %640 = vmatmul.mubr.bf16.gmra.mrb[0].mxu0 %v574
        %v641 = vpop.f32.mrb[0].mxu0
        %v642 = vadd.f32 %v552, %v641
        %v643 = vpop.f32.mrb[0].mxu0
        %v644 = vpop.f32.mrb[0].mxu0
        %v645 = vadd.f32 %v552, %v644
        %v646 = vpop.f32.mrb[0].mxu0
        %647 = vmatprep.mubr.bf16.mxu0 0
        %648 = vmatmul.mubr.bf16.gmra.mrb[0].mxu0 %v577
        %v649 = vpop.f32.mrb[0].mxu0
        %v650 = vadd.f32 %v552, %v649
        %v651 = vpop.f32.mrb[0].mxu0
        %v652 = vpop.f32.mrb[0].mxu0
        %v653 = vadd.f32 %v552, %v652
        %v654 = vpop.f32.mrb[0].mxu0
        %655 = vmatprep.mubr.bf16.mxu0 0
        %656 = vmatmul.mubr.bf16.gmra.mrb[0].mxu0 %v580
        %v657 = vpop.f32.mrb[0].mxu0
        %v658 = vadd.f32 %v552, %v657
        %v659 = vpop.f32.mrb[0].mxu0
        %v660 = vpop.f32.mrb[0].mxu0
        %v661 = vadd.f32 %v552, %v660
        %v662 = vpop.f32.mrb[0].mxu0
        %663 = vmatprep.mubr.bf16.mxu0 0
        %664 = vmatmul.mubr.bf16.gmra.mrb[0].mxu0 %v583
        %v665 = vpop.f32.mrb[0].mxu0
        %v666 = vadd.f32 %v552, %v665
        %v667 = vpop.f32.mrb[0].mxu0
        %v668 = vpop.f32.mrb[0].mxu0
        %v669 = vadd.f32 %v552, %v668
        %v670 = vpop.f32.mrb[0].mxu0
        %671 = vmatprep.mubr.bf16.mxu0 0
        %672 = vmatmul.mubr.bf16.gmra.mrb[0].mxu0 %v586
        %v673 = vpop.f32.mrb[0].mxu0
        %v674 = vadd.f32 %v552, %v673
        %v675 = vpop.f32.mrb[0].mxu0
        %v676 = vpop.f32.mrb[0].mxu0
        %v677 = vadd.f32 %v552, %v676
        %v678 = vpop.f32.mrb[0].mxu0
        %679 = vmatprep.mubr.bf16.mxu0 0
        %680 = vmatmul.mubr.bf16.gmra.mrb[0].mxu0 %v589
        %v681 = vpop.f32.mrb[0].mxu0
        %v682 = vadd.f32 %v552, %v681
        %v683 = vpop.f32.mrb[0].mxu0
        %v684 = vpop.f32.mrb[0].mxu0
        %v685 = vadd.f32 %v552, %v684
        %v686 = vpop.f32.mrb[0].mxu0
        %687 = vdwg.mxu0
        %v688 = vmax.f32 %v626, 0.0
        %v689 = vmax.f32 %v629, 0.0
        %v690 = vmax.f32 %v634, 0.0
        %v691 = vmax.f32 %v637, 0.0
        %v692 = vmax.f32 %v642, 0.0
        %v693 = vmax.f32 %v645, 0.0
        %v694 = vmax.f32 %v650, 0.0
        %v695 = vmax.f32 %v653, 0.0
        %v696 = vmax.f32 %v658, 0.0
        %v697 = vmax.f32 %v661, 0.0
        %v698 = vmax.f32 %v666, 0.0
        %v699 = vmax.f32 %v669, 0.0
        %v700 = vmax.f32 %v674, 0.0
        %v701 = vmax.f32 %v677, 0.0
        %v702 = vmax.f32 %v682, 0.0
        %v703 = vmax.f32 %v685, 0.0
        %v704 = vpack.c.bf16 %v689, %v688
        %v705 = vpack.c.bf16 %v691, %v690
        %v706 = vpack.c.bf16 %v693, %v692
        %v707 = vpack.c.bf16 %v695, %v694
        %v708 = vpack.c.bf16 %v697, %v696
        %v709 = vpack.c.bf16 %v699, %v698
        %v710 = vpack.c.bf16 %v701, %v700
        %v711 = vpack.c.bf16 %v703, %v702
        %v712 = vld [vmem:[%s4] sm:$0xf]
        %v713 = vld [vmem:[%s4 + $0x4] sm:$0xf]
        %v714 = vld [vmem:[%s4 + $0x8] sm:$0xf]
        %v715 = vld [vmem:[%s4 + $0xc] sm:$0xf]
        %v716 = vld [vmem:[%s4 + $0x10] sm:$0xf]
        %v717 = vld [vmem:[%s4 + $0x14] sm:$0xf]
        %v718 = vld [vmem:[%s4 + $0x18] sm:$0xf]
        %v719 = vld [vmem:[%s4 + $0x1c] sm:$0xf]
        %v720 = vld [vmem:[%s4 + $0x20] sm:$0xf]
        %v721 = vld [vmem:[%s4 + $0x24] sm:$0xf]
        %v722 = vld [vmem:[%s4 + $0x28] sm:$0xf]
        %v723 = vld [vmem:[%s4 + $0x2c] sm:$0xf]
        %v724 = vld [vmem:[%s4 + $0x30] sm:$0xf]
        %v725 = vld [vmem:[%s4 + $0x34] sm:$0xf]
        %v726 = vld [vmem:[%s4 + $0x38] sm:$0xf]
        %v727 = vld [vmem:[%s4 + $0x3c] sm:$0xf]
        %v728 = vld [vmem:[%s5] sm:$0x1]
        %v730 = vlaneseq
        %v731 = vshrl.u32 %v730, 7
        %v732 = vsub.s32 0, %v731
        %v733 = vrot.slane %v728, %v732
        %v751 = vunpack.c.l.b16 %v712
        %v752 = vunpack.c.l.b16 %v713
        %v753 = vunpack.c.l.b16 %v714
        %v754 = vunpack.c.l.b16 %v715
        %v755 = vunpack.c.l.b16 %v716
        %v756 = vunpack.c.l.b16 %v717
        %v757 = vunpack.c.l.b16 %v718
        %v758 = vunpack.c.l.b16 %v719
        %v759 = vunpack.c.l.b16 %v720
        %v760 = vunpack.c.l.b16 %v721
        %v761 = vunpack.c.l.b16 %v722
        %v762 = vunpack.c.l.b16 %v723
        %v763 = vunpack.c.l.b16 %v724
        %v764 = vunpack.c.l.b16 %v725
        %v765 = vunpack.c.l.b16 %v726
        %v766 = vunpack.c.l.b16 %v727
        %v767 = vpack.c.b16 %v752, %v751
        %v768 = vpack.c.b16 %v754, %v753
        %v769 = vpack.c.b16 %v756, %v755
        %v770 = vpack.c.b16 %v758, %v757
        %v771 = vpack.c.b16 %v760, %v759
        %v772 = vpack.c.b16 %v762, %v761
        %v773 = vpack.c.b16 %v764, %v763
        %v774 = vpack.c.b16 %v766, %v765
        %783 = vmatprep.subr.bf16.mxu0 0
        %784 = vmatpush1.bf16.msra.mxu0 %v767
        %785 = vmatprep.subr.bf16.mxu0 0
        %786 = vmatpush1.bf16.msra.mxu0 %v768
        %787 = vmatprep.subr.bf16.mxu0 0
        %788 = vmatpush1.bf16.msra.mxu0 %v769
        %789 = vmatprep.subr.bf16.mxu0 0
        %790 = vmatpush1.bf16.msra.mxu0 %v770
        %791 = vmatprep.subr.bf16.mxu0 0
        %792 = vmatpush1.bf16.msra.mxu0 %v771
        %793 = vmatprep.subr.bf16.mxu0 0
        %794 = vmatpush1.bf16.msra.mxu0 %v772
        %795 = vmatprep.subr.bf16.mxu0 0
        %796 = vmatpush1.bf16.msra.mxu0 %v773
        %797 = vmatprep.subr.bf16.mxu0 0
        %798 = vmatpush1.bf16.msra.mxu0 %v774
        %799 = vmatprep.subr.bf16.mxu0 0
        %800 = vmatpush1.bf16.msra.mxu0 0
        %801 = vmatprep.subr.bf16.mxu0 0
        %802 = vmatpush1.bf16.msra.mxu0 0
        %803 = vmatprep.subr.bf16.mxu0 0
        %804 = vmatpush1.bf16.msra.mxu0 0
        %805 = vmatprep.subr.bf16.mxu0 0
        %806 = vmatpush1.bf16.msra.mxu0 0
        %807 = vmatprep.subr.bf16.mxu0 0
        %808 = vmatpush1.bf16.msra.mxu0 0
        %809 = vmatprep.subr.bf16.mxu0 0
        %810 = vmatpush1.bf16.msra.mxu0 0
        %811 = vmatprep.subr.bf16.mxu0 0
        %812 = vmatpush1.bf16.msra.mxu0 0
        %813 = vmatprep.subr.bf16.mxu0 0
        %814 = vmatpush1.bf16.msra.mxu0 0
        %815 = vmatprep.mubr.bf16.mxu0 0
        %816 = vmatmul.mubr.bf16.gmra.mrb[0].mxu0 %v704
        %v817 = vpop.f32.mrb[0].mxu0
        %v818 = vadd.f32 %v733, %v817
        %v819 = vpop.f32.mrb[0].mxu0
        %v820 = vpop.f32.mrb[0].mxu0
        %v821 = vadd.f32 %v733, %v820
        %v822 = vpop.f32.mrb[0].mxu0
        %823 = vmatprep.mubr.bf16.mxu0 0
        %824 = vmatmul.mubr.bf16.gmra.mrb[0].mxu0 %v705
        %v825 = vpop.f32.mrb[0].mxu0
        %v826 = vadd.f32 %v733, %v825
        %v827 = vpop.f32.mrb[0].mxu0
        %v828 = vpop.f32.mrb[0].mxu0
        %v829 = vadd.f32 %v733, %v828
        %v830 = vpop.f32.mrb[0].mxu0
        %831 = vmatprep.mubr.bf16.mxu0 0
        %832 = vmatmul.mubr.bf16.gmra.mrb[0].mxu0 %v706
        %v833 = vpop.f32.mrb[0].mxu0
        %v834 = vadd.f32 %v733, %v833
        %v835 = vpop.f32.mrb[0].mxu0
        %v836 = vpop.f32.mrb[0].mxu0
        %v837 = vadd.f32 %v733, %v836
        %v838 = vpop.f32.mrb[0].mxu0
        %839 = vmatprep.mubr.bf16.mxu0 0
        %840 = vmatmul.mubr.bf16.gmra.mrb[0].mxu0 %v707
        %v841 = vpop.f32.mrb[0].mxu0
        %v842 = vadd.f32 %v733, %v841
        %v843 = vpop.f32.mrb[0].mxu0
        %v844 = vpop.f32.mrb[0].mxu0
        %v845 = vadd.f32 %v733, %v844
        %v846 = vpop.f32.mrb[0].mxu0
        %847 = vmatprep.mubr.bf16.mxu0 0
        %848 = vmatmul.mubr.bf16.gmra.mrb[0].mxu0 %v708
        %v849 = vpop.f32.mrb[0].mxu0
        %v850 = vadd.f32 %v733, %v849
        %v851 = vpop.f32.mrb[0].mxu0
        %v852 = vpop.f32.mrb[0].mxu0
        %v853 = vadd.f32 %v733, %v852
        %v854 = vpop.f32.mrb[0].mxu0
        %855 = vmatprep.mubr.bf16.mxu0 0
        %856 = vmatmul.mubr.bf16.gmra.mrb[0].mxu0 %v709
        %v857 = vpop.f32.mrb[0].mxu0
        %v858 = vadd.f32 %v733, %v857
        %v859 = vpop.f32.mrb[0].mxu0
        %v860 = vpop.f32.mrb[0].mxu0
        %v861 = vadd.f32 %v733, %v860
        %v862 = vpop.f32.mrb[0].mxu0
        %863 = vmatprep.mubr.bf16.mxu0 0
        %864 = vmatmul.mubr.bf16.gmra.mrb[0].mxu0 %v710
        %v865 = vpop.f32.mrb[0].mxu0
        %v866 = vadd.f32 %v733, %v865
        %v867 = vpop.f32.mrb[0].mxu0
        %v868 = vpop.f32.mrb[0].mxu0
        %v869 = vadd.f32 %v733, %v868
        %v870 = vpop.f32.mrb[0].mxu0
        %871 = vmatprep.mubr.bf16.mxu0 0
        %872 = vmatmul.mubr.bf16.gmra.mrb[0].mxu0 %v711
        %v873 = vpop.f32.mrb[0].mxu0
        %v874 = vadd.f32 %v733, %v873
        %v875 = vpop.f32.mrb[0].mxu0
        %v876 = vpop.f32.mrb[0].mxu0
        %v877 = vadd.f32 %v733, %v876
        %v878 = vpop.f32.mrb[0].mxu0
        %879 = vdwg.mxu0
        %v880 = vld [vmem:[%s516] sm:$0xff]
        %v881 = vld [vmem:[%s516 + $0x8] sm:$0xff]
        %v882 = vld [vmem:[%s516 + $0x10] sm:$0xff]
        %v883 = vld [vmem:[%s516 + $0x18] sm:$0xff]
        %v884 = vld [vmem:[%s516 + $0x20] sm:$0xff]
        %v885 = vld [vmem:[%s516 + $0x28] sm:$0xff]
        %v886 = vld [vmem:[%s516 + $0x30] sm:$0xff]
        %v887 = vld [vmem:[%s516 + $0x38] sm:$0xff]
        %v888 = vld [vmem:[%s516 + $0x40] sm:$0xff]
        %v889 = vld [vmem:[%s516 + $0x48] sm:$0xff]
        %v890 = vld [vmem:[%s516 + $0x50] sm:$0xff]
        %v891 = vld [vmem:[%s516 + $0x58] sm:$0xff]
        %v892 = vld [vmem:[%s516 + $0x60] sm:$0xff]
        %v893 = vld [vmem:[%s516 + $0x68] sm:$0xff]
        %v894 = vld [vmem:[%s516 + $0x70] sm:$0xff]
        %v895 = vld [vmem:[%s516 + $0x78] sm:$0xff]
        %v896 = vpack.c.bf16 %v881, %v880
        %v897 = vpack.c.bf16 %v883, %v882
        %v898 = vpack.c.bf16 %v885, %v884
        %v899 = vpack.c.bf16 %v887, %v886
        %v900 = vpack.c.bf16 %v889, %v888
        %v901 = vpack.c.bf16 %v891, %v890
        %v902 = vpack.c.bf16 %v893, %v892
        %v903 = vpack.c.bf16 %v895, %v894
        %v904 = vld [vmem:[%s6] sm:$0xf]
        %v905 = vld [vmem:[%s6 + $0x4] sm:$0xf]
        %v906 = vld [vmem:[%s6 + $0x8] sm:$0xf]
        %v907 = vld [vmem:[%s6 + $0xc] sm:$0xf]
        %v908 = vld [vmem:[%s6 + $0x10] sm:$0xf]
        %v909 = vld [vmem:[%s6 + $0x14] sm:$0xf]
        %v910 = vld [vmem:[%s7] sm:$0x1]
        %v912 = vlaneseq
        %v913 = vshrl.u32 %v912, 7
        %v914 = vsub.s32 0, %v913
        %v915 = vrot.slane %v910, %v914
        %v923 = vunpack.c.l.b16 %v904
        %v924 = vunpack.c.l.b16 %v905
        %v925 = vunpack.c.l.b16 %v906
        %v926 = vunpack.c.l.b16 %v907
        %v927 = vunpack.c.l.b16 %v908
        %v928 = vunpack.c.l.b16 %v909
        %v929 = vpack.c.b16 %v924, %v923
        %v930 = vpack.c.b16 %v926, %v925
        %v931 = vpack.c.b16 %v928, %v927
        %vm935 = vcmask 392192
        %v937 = vsel %vm935, %v896, 0
        %v940 = vsel %vm935, %v897, 0
        %v943 = vsel %vm935, %v898, 0
        %v946 = vsel %vm935, %v899, 0
        %v949 = vsel %vm935, %v900, 0
        %v952 = vsel %vm935, %v901, 0
        %v955 = vsel %vm935, %v902, 0
        %v958 = vsel %vm935, %v903, 0
        %960 = vmatprep.subr.bf16.mxu0 0
        %961 = vmatpush1.bf16.msra.mxu0 %v929
        %962 = vmatprep.subr.bf16.mxu0 0
        %963 = vmatpush1.bf16.msra.mxu0 %v930
        %964 = vmatprep.subr.bf16.mxu0 0
        %965 = vmatpush1.bf16.msra.mxu0 %v931
        %966 = vmatprep.subr.bf16.mxu0 0
        %967 = vmatpush1.bf16.msra.mxu0 0
        %968 = vmatprep.subr.bf16.mxu0 0
        %969 = vmatpush1.bf16.msra.mxu0 0
        %970 = vmatprep.subr.bf16.mxu0 0
        %971 = vmatpush1.bf16.msra.mxu0 0
        %972 = vmatprep.subr.bf16.mxu0 0
        %973 = vmatpush1.bf16.msra.mxu0 0
        %974 = vmatprep.subr.bf16.mxu0 0
        %975 = vmatpush1.bf16.msra.mxu0 0
        %976 = vmatprep.subr.bf16.mxu0 0
        %977 = vmatpush1.bf16.msra.mxu0 0
        %978 = vmatprep.subr.bf16.mxu0 0
        %979 = vmatpush1.bf16.msra.mxu0 0
        %980 = vmatprep.subr.bf16.mxu0 0
        %981 = vmatpush1.bf16.msra.mxu0 0
        %982 = vmatprep.subr.bf16.mxu0 0
        %983 = vmatpush1.bf16.msra.mxu0 0
        %984 = vmatprep.subr.bf16.mxu0 0
        %985 = vmatpush1.bf16.msra.mxu0 0
        %986 = vmatprep.subr.bf16.mxu0 0
        %987 = vmatpush1.bf16.msra.mxu0 0
        %988 = vmatprep.subr.bf16.mxu0 0
        %989 = vmatpush1.bf16.msra.mxu0 0
        %990 = vmatprep.subr.bf16.mxu0 0
        %991 = vmatpush1.bf16.msra.mxu0 0
        %992 = vmatprep.mubr.bf16.mxu0 0
        %993 = vmatmul.mubr.bf16.gmra.mrb[0].mxu0 %v937
        %v994 = vpop.f32.mrb[0].mxu0
        %v995 = vadd.f32 %v915, %v994
        %v996 = vpop.f32.mrb[0].mxu0
        %v997 = vpop.f32.mrb[0].mxu0
        %v998 = vadd.f32 %v915, %v997
        %v999 = vpop.f32.mrb[0].mxu0
        %1000 = vmatprep.mubr.bf16.mxu0 0
        %1001 = vmatmul.mubr.bf16.gmra.mrb[0].mxu0 %v940
        %v1002 = vpop.f32.mrb[0].mxu0
        %v1003 = vadd.f32 %v915, %v1002
        %v1004 = vpop.f32.mrb[0].mxu0
        %v1005 = vpop.f32.mrb[0].mxu0
        %v1006 = vadd.f32 %v915, %v1005
        %v1007 = vpop.f32.mrb[0].mxu0
        %1008 = vmatprep.mubr.bf16.mxu0 0
        %1009 = vmatmul.mubr.bf16.gmra.mrb[0].mxu0 %v943
        %v1010 = vpop.f32.mrb[0].mxu0
        %v1011 = vadd.f32 %v915, %v1010
        %v1012 = vpop.f32.mrb[0].mxu0
        %v1013 = vpop.f32.mrb[0].mxu0
        %v1014 = vadd.f32 %v915, %v1013
        %v1015 = vpop.f32.mrb[0].mxu0
        %1016 = vmatprep.mubr.bf16.mxu0 0
        %1017 = vmatmul.mubr.bf16.gmra.mrb[0].mxu0 %v946
        %v1018 = vpop.f32.mrb[0].mxu0
        %v1019 = vadd.f32 %v915, %v1018
        %v1020 = vpop.f32.mrb[0].mxu0
        %v1021 = vpop.f32.mrb[0].mxu0
        %v1022 = vadd.f32 %v915, %v1021
        %v1023 = vpop.f32.mrb[0].mxu0
        %1024 = vmatprep.mubr.bf16.mxu0 0
        %1025 = vmatmul.mubr.bf16.gmra.mrb[0].mxu0 %v949
        %v1026 = vpop.f32.mrb[0].mxu0
        %v1027 = vadd.f32 %v915, %v1026
        %v1028 = vpop.f32.mrb[0].mxu0
        %v1029 = vpop.f32.mrb[0].mxu0
        %v1030 = vadd.f32 %v915, %v1029
        %v1031 = vpop.f32.mrb[0].mxu0
        %1032 = vmatprep.mubr.bf16.mxu0 0
        %1033 = vmatmul.mubr.bf16.gmra.mrb[0].mxu0 %v952
        %v1034 = vpop.f32.mrb[0].mxu0
        %v1035 = vadd.f32 %v915, %v1034
        %v1036 = vpop.f32.mrb[0].mxu0
        %v1037 = vpop.f32.mrb[0].mxu0
        %v1038 = vadd.f32 %v915, %v1037
        %v1039 = vpop.f32.mrb[0].mxu0
        %1040 = vmatprep.mubr.bf16.mxu0 0
        %1041 = vmatmul.mubr.bf16.gmra.mrb[0].mxu0 %v955
        %v1042 = vpop.f32.mrb[0].mxu0
        %v1043 = vadd.f32 %v915, %v1042
        %v1044 = vpop.f32.mrb[0].mxu0
        %v1045 = vpop.f32.mrb[0].mxu0
        %v1046 = vadd.f32 %v915, %v1045
        %v1047 = vpop.f32.mrb[0].mxu0
        %1048 = vmatprep.mubr.bf16.mxu0 0
        %1049 = vmatmul.mubr.bf16.gmra.mrb[0].mxu0 %v958
        %v1050 = vpop.f32.mrb[0].mxu0
        %v1051 = vadd.f32 %v915, %v1050
        %v1052 = vpop.f32.mrb[0].mxu0
        %v1053 = vpop.f32.mrb[0].mxu0
        %v1054 = vadd.f32 %v915, %v1053
        %v1055 = vpop.f32.mrb[0].mxu0
        %1056 = vdwg.mxu0
        %v1057 = vmax.f32 %v995, 0.0
        %v1058 = vmax.f32 %v998, 0.0
        %v1059 = vmax.f32 %v1003, 0.0
        %v1060 = vmax.f32 %v1006, 0.0
        %v1061 = vmax.f32 %v1011, 0.0
        %v1062 = vmax.f32 %v1014, 0.0
        %v1063 = vmax.f32 %v1019, 0.0
        %v1064 = vmax.f32 %v1022, 0.0
        %v1065 = vmax.f32 %v1027, 0.0
        %v1066 = vmax.f32 %v1030, 0.0
        %v1067 = vmax.f32 %v1035, 0.0
        %v1068 = vmax.f32 %v1038, 0.0
        %v1069 = vmax.f32 %v1043, 0.0
        %v1070 = vmax.f32 %v1046, 0.0
        %v1071 = vmax.f32 %v1051, 0.0
        %v1072 = vmax.f32 %v1054, 0.0
        %v1073 = vpack.c.bf16 %v1058, %v1057
        %v1074 = vpack.c.bf16 %v1060, %v1059
        %v1075 = vpack.c.bf16 %v1062, %v1061
        %v1076 = vpack.c.bf16 %v1064, %v1063
        %v1077 = vpack.c.bf16 %v1066, %v1065
        %v1078 = vpack.c.bf16 %v1068, %v1067
        %v1079 = vpack.c.bf16 %v1070, %v1069
        %v1080 = vpack.c.bf16 %v1072, %v1071
        %v1081 = vld [vmem:[%s8] sm:$0xf]
        %v1082 = vld [vmem:[%s8 + $0x4] sm:$0xf]
        %v1083 = vld [vmem:[%s8 + $0x8] sm:$0xf]
        %v1084 = vld [vmem:[%s8 + $0xc] sm:$0xf]
        %v1085 = vld [vmem:[%s8 + $0x10] sm:$0xf]
        %v1086 = vld [vmem:[%s8 + $0x14] sm:$0xf]
        %v1087 = vld [vmem:[%s8 + $0x18] sm:$0xf]
        %v1088 = vld [vmem:[%s8 + $0x1c] sm:$0xf]
        %v1089 = vld [vmem:[%s8 + $0x20] sm:$0xf]
        %v1090 = vld [vmem:[%s8 + $0x24] sm:$0xf]
        %v1091 = vld [vmem:[%s8 + $0x28] sm:$0xf]
        %v1092 = vld [vmem:[%s8 + $0x2c] sm:$0xf]
        %v1093 = vld [vmem:[%s8 + $0x30] sm:$0xf]
        %v1094 = vld [vmem:[%s8 + $0x34] sm:$0xf]
        %v1095 = vld [vmem:[%s8 + $0x38] sm:$0xf]
        %v1096 = vld [vmem:[%s8 + $0x3c] sm:$0xf]
        %v1097 = vld [vmem:[%s9] sm:$0x1]
        %v1099 = vlaneseq
        %v1100 = vshrl.u32 %v1099, 7
        %v1101 = vsub.s32 0, %v1100
        %v1102 = vrot.slane %v1097, %v1101
        %v1120 = vunpack.c.l.b16 %v1081
        %v1121 = vunpack.c.l.b16 %v1082
        %v1122 = vunpack.c.l.b16 %v1083
        %v1123 = vunpack.c.l.b16 %v1084
        %v1124 = vunpack.c.l.b16 %v1085
        %v1125 = vunpack.c.l.b16 %v1086
        %v1126 = vunpack.c.l.b16 %v1087
        %v1127 = vunpack.c.l.b16 %v1088
        %v1128 = vunpack.c.l.b16 %v1089
        %v1129 = vunpack.c.l.b16 %v1090
        %v1130 = vunpack.c.l.b16 %v1091
        %v1131 = vunpack.c.l.b16 %v1092
        %v1132 = vunpack.c.l.b16 %v1093
        %v1133 = vunpack.c.l.b16 %v1094
        %v1134 = vunpack.c.l.b16 %v1095
        %v1135 = vunpack.c.l.b16 %v1096
        %v1136 = vpack.c.b16 %v1121, %v1120
        %v1137 = vpack.c.b16 %v1123, %v1122
        %v1138 = vpack.c.b16 %v1125, %v1124
        %v1139 = vpack.c.b16 %v1127, %v1126
        %v1140 = vpack.c.b16 %v1129, %v1128
        %v1141 = vpack.c.b16 %v1131, %v1130
        %v1142 = vpack.c.b16 %v1133, %v1132
        %v1143 = vpack.c.b16 %v1135, %v1134
        %1152 = vmatprep.subr.bf16.mxu0 0
        %1153 = vmatpush1.bf16.msra.mxu0 %v1136
        %1154 = vmatprep.subr.bf16.mxu0 0
        %1155 = vmatpush1.bf16.msra.mxu0 %v1137
        %1156 = vmatprep.subr.bf16.mxu0 0
        %1157 = vmatpush1.bf16.msra.mxu0 %v1138
        %1158 = vmatprep.subr.bf16.mxu0 0
        %1159 = vmatpush1.bf16.msra.mxu0 %v1139
        %1160 = vmatprep.subr.bf16.mxu0 0
        %1161 = vmatpush1.bf16.msra.mxu0 %v1140
        %1162 = vmatprep.subr.bf16.mxu0 0
        %1163 = vmatpush1.bf16.msra.mxu0 %v1141
        %1164 = vmatprep.subr.bf16.mxu0 0
        %1165 = vmatpush1.bf16.msra.mxu0 %v1142
        %1166 = vmatprep.subr.bf16.mxu0 0
        %1167 = vmatpush1.bf16.msra.mxu0 %v1143
        %1168 = vmatprep.subr.bf16.mxu0 0
        %1169 = vmatpush1.bf16.msra.mxu0 0
        %1170 = vmatprep.subr.bf16.mxu0 0
        %1171 = vmatpush1.bf16.msra.mxu0 0
        %1172 = vmatprep.subr.bf16.mxu0 0
        %1173 = vmatpush1.bf16.msra.mxu0 0
        %1174 = vmatprep.subr.bf16.mxu0 0
        %1175 = vmatpush1.bf16.msra.mxu0 0
        %1176 = vmatprep.subr.bf16.mxu0 0
        %1177 = vmatpush1.bf16.msra.mxu0 0
        %1178 = vmatprep.subr.bf16.mxu0 0
        %1179 = vmatpush1.bf16.msra.mxu0 0
        %1180 = vmatprep.subr.bf16.mxu0 0
        %1181 = vmatpush1.bf16.msra.mxu0 0
        %1182 = vmatprep.subr.bf16.mxu0 0
        %1183 = vmatpush1.bf16.msra.mxu0 0
        %1184 = vmatprep.mubr.bf16.mxu0 0
        %1185 = vmatmul.mubr.bf16.gmra.mrb[0].mxu0 %v1073
        %v1186 = vpop.f32.mrb[0].mxu0
        %v1187 = vadd.f32 %v1102, %v1186
        %v1188 = vpop.f32.mrb[0].mxu0
        %v1189 = vpop.f32.mrb[0].mxu0
        %v1190 = vadd.f32 %v1102, %v1189
        %v1191 = vpop.f32.mrb[0].mxu0
        %1192 = vmatprep.mubr.bf16.mxu0 0
        %1193 = vmatmul.mubr.bf16.gmra.mrb[0].mxu0 %v1074
        %v1194 = vpop.f32.mrb[0].mxu0
        %v1195 = vadd.f32 %v1102, %v1194
        %v1196 = vpop.f32.mrb[0].mxu0
        %v1197 = vpop.f32.mrb[0].mxu0
        %v1198 = vadd.f32 %v1102, %v1197
        %v1199 = vpop.f32.mrb[0].mxu0
        %1200 = vmatprep.mubr.bf16.mxu0 0
        %1201 = vmatmul.mubr.bf16.gmra.mrb[0].mxu0 %v1075
        %v1202 = vpop.f32.mrb[0].mxu0
        %v1203 = vadd.f32 %v1102, %v1202
        %v1204 = vpop.f32.mrb[0].mxu0
        %v1205 = vpop.f32.mrb[0].mxu0
        %v1206 = vadd.f32 %v1102, %v1205
        %v1207 = vpop.f32.mrb[0].mxu0
        %1208 = vmatprep.mubr.bf16.mxu0 0
        %1209 = vmatmul.mubr.bf16.gmra.mrb[0].mxu0 %v1076
        %v1210 = vpop.f32.mrb[0].mxu0
        %v1211 = vadd.f32 %v1102, %v1210
        %v1212 = vpop.f32.mrb[0].mxu0
        %v1213 = vpop.f32.mrb[0].mxu0
        %v1214 = vadd.f32 %v1102, %v1213
        %v1215 = vpop.f32.mrb[0].mxu0
        %1216 = vmatprep.mubr.bf16.mxu0 0
        %1217 = vmatmul.mubr.bf16.gmra.mrb[0].mxu0 %v1077
        %v1218 = vpop.f32.mrb[0].mxu0
        %v1219 = vadd.f32 %v1102, %v1218
        %v1220 = vpop.f32.mrb[0].mxu0
        %v1221 = vpop.f32.mrb[0].mxu0
        %v1222 = vadd.f32 %v1102, %v1221
        %v1223 = vpop.f32.mrb[0].mxu0
        %1224 = vmatprep.mubr.bf16.mxu0 0
        %1225 = vmatmul.mubr.bf16.gmra.mrb[0].mxu0 %v1078
        %v1226 = vpop.f32.mrb[0].mxu0
        %v1227 = vadd.f32 %v1102, %v1226
        %v1228 = vpop.f32.mrb[0].mxu0
        %v1229 = vpop.f32.mrb[0].mxu0
        %v1230 = vadd.f32 %v1102, %v1229
        %v1231 = vpop.f32.mrb[0].mxu0
        %1232 = vmatprep.mubr.bf16.mxu0 0
        %1233 = vmatmul.mubr.bf16.gmra.mrb[0].mxu0 %v1079
        %v1234 = vpop.f32.mrb[0].mxu0
        %v1235 = vadd.f32 %v1102, %v1234
        %v1236 = vpop.f32.mrb[0].mxu0
        %v1237 = vpop.f32.mrb[0].mxu0
        %v1238 = vadd.f32 %v1102, %v1237
        %v1239 = vpop.f32.mrb[0].mxu0
        %1240 = vmatprep.mubr.bf16.mxu0 0
        %1241 = vmatmul.mubr.bf16.gmra.mrb[0].mxu0 %v1080
        %v1242 = vpop.f32.mrb[0].mxu0
        %v1243 = vadd.f32 %v1102, %v1242
        %v1244 = vpop.f32.mrb[0].mxu0
        %v1245 = vpop.f32.mrb[0].mxu0
        %v1246 = vadd.f32 %v1102, %v1245
        %v1247 = vpop.f32.mrb[0].mxu0
        %1248 = vdwg.mxu0
        %v1249 = vpack.c.bf16 %v821, %v818
        %v1250 = vpack.c.bf16 %v829, %v826
        %v1251 = vpack.c.bf16 %v837, %v834
        %v1252 = vpack.c.bf16 %v845, %v842
        %v1253 = vpack.c.bf16 %v853, %v850
        %v1254 = vpack.c.bf16 %v861, %v858
        %v1255 = vpack.c.bf16 %v869, %v866
        %v1256 = vpack.c.bf16 %v877, %v874
        %v1257 = vld [vmem:[%s10] sm:$0xf]
        %v1258 = vld [vmem:[%s10 + $0x4] sm:$0xf]
        %v1259 = vld [vmem:[%s10 + $0x8] sm:$0xf]
        %v1260 = vld [vmem:[%s10 + $0xc] sm:$0xf]
        %v1261 = vpack.c.bf16 %v1190, %v1187
        %v1262 = vpack.c.bf16 %v1198, %v1195
        %v1263 = vpack.c.bf16 %v1206, %v1203
        %v1264 = vpack.c.bf16 %v1214, %v1211
        %v1265 = vpack.c.bf16 %v1222, %v1219
        %v1266 = vpack.c.bf16 %v1230, %v1227
        %v1267 = vpack.c.bf16 %v1238, %v1235
        %v1268 = vpack.c.bf16 %v1246, %v1243
        %v1269 = vld [vmem:[%s11] sm:$0xf]
        %v1270 = vld [vmem:[%s11 + $0x4] sm:$0xf]
        %v1271 = vld [vmem:[%s11 + $0x8] sm:$0xf]
        %v1272 = vld [vmem:[%s11 + $0xc] sm:$0xf]
        %v1277 = vunpack.c.l.b16 %v1269
        %v1278 = vunpack.c.l.b16 %v1270
        %v1279 = vunpack.c.l.b16 %v1271
        %v1280 = vunpack.c.l.b16 %v1272
        %v1281 = vpack.c.b16 %v1278, %v1277
        %v1282 = vpack.c.b16 %v1280, %v1279
        %v1286 = vsel %vm566, %v1261, 0
        %v1289 = vsel %vm566, %v1262, 0
        %v1292 = vsel %vm566, %v1263, 0
        %v1295 = vsel %vm566, %v1264, 0
        %v1298 = vsel %vm566, %v1265, 0
        %v1301 = vsel %vm566, %v1266, 0
        %v1304 = vsel %vm566, %v1267, 0
        %v1307 = vsel %vm566, %v1268, 0
        %1309 = vmatprep.subr.bf16.mxu0 0
        %1310 = vmatpush1.bf16.msra.mxu0 %v1281
        %1311 = vmatprep.subr.bf16.mxu0 0
        %1312 = vmatpush1.bf16.msra.mxu0 %v1282
        %1313 = vmatprep.subr.bf16.mxu0 0
        %1314 = vmatpush1.bf16.msra.mxu0 0
        %1315 = vmatprep.subr.bf16.mxu0 0
        %1316 = vmatpush1.bf16.msra.mxu0 0
        %1317 = vmatprep.subr.bf16.mxu0 0
        %1318 = vmatpush1.bf16.msra.mxu0 0
        %1319 = vmatprep.subr.bf16.mxu0 0
        %1320 = vmatpush1.bf16.msra.mxu0 0
        %1321 = vmatprep.subr.bf16.mxu0 0
        %1322 = vmatpush1.bf16.msra.mxu0 0
        %1323 = vmatprep.subr.bf16.mxu0 0
        %1324 = vmatpush1.bf16.msra.mxu0 0
        %1325 = vmatprep.subr.bf16.mxu0 0
        %1326 = vmatpush1.bf16.msra.mxu0 0
        %1327 = vmatprep.subr.bf16.mxu0 0
        %1328 = vmatpush1.bf16.msra.mxu0 0
        %1329 = vmatprep.subr.bf16.mxu0 0
        %1330 = vmatpush1.bf16.msra.mxu0 0
        %1331 = vmatprep.subr.bf16.mxu0 0
        %1332 = vmatpush1.bf16.msra.mxu0 0
        %1333 = vmatprep.subr.bf16.mxu0 0
        %1334 = vmatpush1.bf16.msra.mxu0 0
        %1335 = vmatprep.subr.bf16.mxu0 0
        %1336 = vmatpush1.bf16.msra.mxu0 0
        %1337 = vmatprep.subr.bf16.mxu0 0
        %1338 = vmatpush1.bf16.msra.mxu0 0
        %1339 = vmatprep.subr.bf16.mxu0 0
        %1340 = vmatpush1.bf16.msra.mxu0 0
        %1341 = vmatprep.mubr.bf16.mxu0 0
        %1342 = vmatmul.mubr.bf16.gmra.mrb[0].mxu0 %v1286
        %v1343 = vpop.f32.mrb[0].mxu0
        %v1344 = vadd.f32 0.0, %v1343
        %v1345 = vpop.f32.mrb[0].mxu0
        %v1346 = vpop.f32.mrb[0].mxu0
        %v1347 = vadd.f32 0.0, %v1346
        %v1348 = vpop.f32.mrb[0].mxu0
        %1349 = vmatprep.mubr.bf16.mxu0 0
        %1350 = vmatmul.mubr.bf16.gmra.mrb[0].mxu0 %v1289
        %v1351 = vpop.f32.mrb[0].mxu0
        %v1352 = vadd.f32 0.0, %v1351
        %v1353 = vpop.f32.mrb[0].mxu0
        %v1354 = vpop.f32.mrb[0].mxu0
        %v1355 = vadd.f32 0.0, %v1354
        %v1356 = vpop.f32.mrb[0].mxu0
        %1357 = vmatprep.mubr.bf16.mxu0 0
        %1358 = vmatmul.mubr.bf16.gmra.mrb[0].mxu0 %v1292
        %v1359 = vpop.f32.mrb[0].mxu0
        %v1360 = vadd.f32 0.0, %v1359
        %v1361 = vpop.f32.mrb[0].mxu0
        %v1362 = vpop.f32.mrb[0].mxu0
        %v1363 = vadd.f32 0.0, %v1362
        %v1364 = vpop.f32.mrb[0].mxu0
        %1365 = vmatprep.mubr.bf16.mxu0 0
        %1366 = vmatmul.mubr.bf16.gmra.mrb[0].mxu0 %v1295
        %v1367 = vpop.f32.mrb[0].mxu0
        %v1368 = vadd.f32 0.0, %v1367
        %v1369 = vpop.f32.mrb[0].mxu0
        %v1370 = vpop.f32.mrb[0].mxu0
        %v1371 = vadd.f32 0.0, %v1370
        %v1372 = vpop.f32.mrb[0].mxu0
        %1373 = vmatprep.mubr.bf16.mxu0 0
        %1374 = vmatmul.mubr.bf16.gmra.mrb[0].mxu0 %v1298
        %v1375 = vpop.f32.mrb[0].mxu0
        %v1376 = vadd.f32 0.0, %v1375
        %v1377 = vpop.f32.mrb[0].mxu0
        %v1378 = vpop.f32.mrb[0].mxu0
        %v1379 = vadd.f32 0.0, %v1378
        %v1380 = vpop.f32.mrb[0].mxu0
        %1381 = vmatprep.mubr.bf16.mxu0 0
        %1382 = vmatmul.mubr.bf16.gmra.mrb[0].mxu0 %v1301
        %v1383 = vpop.f32.mrb[0].mxu0
        %v1384 = vadd.f32 0.0, %v1383
        %v1385 = vpop.f32.mrb[0].mxu0
        %v1386 = vpop.f32.mrb[0].mxu0
        %v1387 = vadd.f32 0.0, %v1386
        %v1388 = vpop.f32.mrb[0].mxu0
        %1389 = vmatprep.mubr.bf16.mxu0 0
        %1390 = vmatmul.mubr.bf16.gmra.mrb[0].mxu0 %v1304
        %v1391 = vpop.f32.mrb[0].mxu0
        %v1392 = vadd.f32 0.0, %v1391
        %v1393 = vpop.f32.mrb[0].mxu0
        %v1394 = vpop.f32.mrb[0].mxu0
        %v1395 = vadd.f32 0.0, %v1394
        %v1396 = vpop.f32.mrb[0].mxu0
        %1397 = vmatprep.mubr.bf16.mxu0 0
        %1398 = vmatmul.mubr.bf16.gmra.mrb[0].mxu0 %v1307
        %v1399 = vpop.f32.mrb[0].mxu0
        %v1400 = vadd.f32 0.0, %v1399
        %v1401 = vpop.f32.mrb[0].mxu0
        %v1402 = vpop.f32.mrb[0].mxu0
        %v1403 = vadd.f32 0.0, %v1402
        %v1404 = vpop.f32.mrb[0].mxu0
        %1405 = vdwg.mxu0
        %v1410 = vunpack.c.l.b16 %v1257
        %v1411 = vunpack.c.l.b16 %v1258
        %v1412 = vunpack.c.l.b16 %v1259
        %v1413 = vunpack.c.l.b16 %v1260
        %v1414 = vpack.c.b16 %v1411, %v1410
        %v1415 = vpack.c.b16 %v1413, %v1412
        %v1419 = vsel %vm566, %v1249, 0
        %v1422 = vsel %vm566, %v1250, 0
        %v1425 = vsel %vm566, %v1251, 0
        %v1428 = vsel %vm566, %v1252, 0
        %v1431 = vsel %vm566, %v1253, 0
        %v1434 = vsel %vm566, %v1254, 0
        %v1437 = vsel %vm566, %v1255, 0
        %v1440 = vsel %vm566, %v1256, 0
        %1442 = vmatprep.subr.bf16.mxu0 0
        %1443 = vmatpush1.bf16.msra.mxu0 %v1414
        %1444 = vmatprep.subr.bf16.mxu0 0
        %1445 = vmatpush1.bf16.msra.mxu0 %v1415
        %1446 = vmatprep.subr.bf16.mxu0 0
        %1447 = vmatpush1.bf16.msra.mxu0 0
        %1448 = vmatprep.subr.bf16.mxu0 0
        %1449 = vmatpush1.bf16.msra.mxu0 0
        %1450 = vmatprep.subr.bf16.mxu0 0
        %1451 = vmatpush1.bf16.msra.mxu0 0
        %1452 = vmatprep.subr.bf16.mxu0 0
        %1453 = vmatpush1.bf16.msra.mxu0 0
        %1454 = vmatprep.subr.bf16.mxu0 0
        %1455 = vmatpush1.bf16.msra.mxu0 0
        %1456 = vmatprep.subr.bf16.mxu0 0
        %1457 = vmatpush1.bf16.msra.mxu0 0
        %1458 = vmatprep.subr.bf16.mxu0 0
        %1459 = vmatpush1.bf16.msra.mxu0 0
        %1460 = vmatprep.subr.bf16.mxu0 0
        %1461 = vmatpush1.bf16.msra.mxu0 0
        %1462 = vmatprep.subr.bf16.mxu0 0
        %1463 = vmatpush1.bf16.msra.mxu0 0
        %1464 = vmatprep.subr.bf16.mxu0 0
        %1465 = vmatpush1.bf16.msra.mxu0 0
        %1466 = vmatprep.subr.bf16.mxu0 0
        %1467 = vmatpush1.bf16.msra.mxu0 0
        %1468 = vmatprep.subr.bf16.mxu0 0
        %1469 = vmatpush1.bf16.msra.mxu0 0
        %1470 = vmatprep.subr.bf16.mxu0 0
        %1471 = vmatpush1.bf16.msra.mxu0 0
        %1472 = vmatprep.subr.bf16.mxu0 0
        %1473 = vmatpush1.bf16.msra.mxu0 0
        %1474 = vmatprep.mubr.bf16.mxu0 0
        %1475 = vmatmul.mubr.bf16.gmra.mrb[0].mxu0 %v1419
        %v1476 = vpop.f32.mrb[0].mxu0
        %v1477 = vadd.f32 %v1344, %v1476
        %v1478 = vpop.f32.mrb[0].mxu0
        %v1479 = vpop.f32.mrb[0].mxu0
        %v1480 = vadd.f32 %v1347, %v1479
        %v1481 = vpop.f32.mrb[0].mxu0
        %1482 = vmatprep.mubr.bf16.mxu0 0
        %1483 = vmatmul.mubr.bf16.gmra.mrb[0].mxu0 %v1422
        %v1484 = vpop.f32.mrb[0].mxu0
        %v1485 = vadd.f32 %v1352, %v1484
        %v1486 = vpop.f32.mrb[0].mxu0
        %v1487 = vpop.f32.mrb[0].mxu0
        %v1488 = vadd.f32 %v1355, %v1487
        %v1489 = vpop.f32.mrb[0].mxu0
        %1490 = vmatprep.mubr.bf16.mxu0 0
        %1491 = vmatmul.mubr.bf16.gmra.mrb[0].mxu0 %v1425
        %v1492 = vpop.f32.mrb[0].mxu0
        %v1493 = vadd.f32 %v1360, %v1492
        %v1494 = vpop.f32.mrb[0].mxu0
        %v1495 = vpop.f32.mrb[0].mxu0
        %v1496 = vadd.f32 %v1363, %v1495
        %v1497 = vpop.f32.mrb[0].mxu0
        %1498 = vmatprep.mubr.bf16.mxu0 0
        %1499 = vmatmul.mubr.bf16.gmra.mrb[0].mxu0 %v1428
        %v1500 = vpop.f32.mrb[0].mxu0
        %v1501 = vadd.f32 %v1368, %v1500
        %v1502 = vpop.f32.mrb[0].mxu0
        %v1503 = vpop.f32.mrb[0].mxu0
        %v1504 = vadd.f32 %v1371, %v1503
        %v1505 = vpop.f32.mrb[0].mxu0
        %1506 = vmatprep.mubr.bf16.mxu0 0
        %1507 = vmatmul.mubr.bf16.gmra.mrb[0].mxu0 %v1431
        %v1508 = vpop.f32.mrb[0].mxu0
        %v1509 = vadd.f32 %v1376, %v1508
        %v1510 = vpop.f32.mrb[0].mxu0
        %v1511 = vpop.f32.mrb[0].mxu0
        %v1512 = vadd.f32 %v1379, %v1511
        %v1513 = vpop.f32.mrb[0].mxu0
        %1514 = vmatprep.mubr.bf16.mxu0 0
        %1515 = vmatmul.mubr.bf16.gmra.mrb[0].mxu0 %v1434
        %v1516 = vpop.f32.mrb[0].mxu0
        %v1517 = vadd.f32 %v1384, %v1516
        %v1518 = vpop.f32.mrb[0].mxu0
        %v1519 = vpop.f32.mrb[0].mxu0
        %v1520 = vadd.f32 %v1387, %v1519
        %v1521 = vpop.f32.mrb[0].mxu0
        %1522 = vmatprep.mubr.bf16.mxu0 0
        %1523 = vmatmul.mubr.bf16.gmra.mrb[0].mxu0 %v1437
        %v1524 = vpop.f32.mrb[0].mxu0
        %v1525 = vadd.f32 %v1392, %v1524
        %v1526 = vpop.f32.mrb[0].mxu0
        %v1527 = vpop.f32.mrb[0].mxu0
        %v1528 = vadd.f32 %v1395, %v1527
        %v1529 = vpop.f32.mrb[0].mxu0
        %1530 = vmatprep.mubr.bf16.mxu0 0
        %1531 = vmatmul.mubr.bf16.gmra.mrb[0].mxu0 %v1440
        %v1532 = vpop.f32.mrb[0].mxu0
        %v1533 = vadd.f32 %v1400, %v1532
        %v1534 = vpop.f32.mrb[0].mxu0
        %v1535 = vpop.f32.mrb[0].mxu0
        %v1536 = vadd.f32 %v1403, %v1535
        %v1537 = vpop.f32.mrb[0].mxu0
        %1538 = vdwg.mxu0
        %v1539 = vld [vmem:[%s12] sm:$0x1]
        %v1541 = vlaneseq
        %v1542 = vshrl.u32 %v1541, 7
        %v1543 = vsub.s32 0, %v1542
        %v1544 = vrot.slane %v1539, %v1543
        %v1546 = vadd.f32 %v1477, %v1544
        %v1547 = vadd.f32 %v1480, %v1544
        %v1548 = vadd.f32 %v1485, %v1544
        %v1549 = vadd.f32 %v1488, %v1544
        %v1550 = vadd.f32 %v1493, %v1544
        %v1551 = vadd.f32 %v1496, %v1544
        %v1552 = vadd.f32 %v1501, %v1544
        %v1553 = vadd.f32 %v1504, %v1544
        %v1554 = vadd.f32 %v1509, %v1544
        %v1555 = vadd.f32 %v1512, %v1544
        %v1556 = vadd.f32 %v1517, %v1544
        %v1557 = vadd.f32 %v1520, %v1544
        %v1558 = vadd.f32 %v1525, %v1544
        %v1559 = vadd.f32 %v1528, %v1544
        %v1560 = vadd.f32 %v1533, %v1544
        %v1561 = vadd.f32 %v1536, %v1544
        %v1562 = vmax.f32 %v1546, 0.0
        %v1563 = vmax.f32 %v1547, 0.0
        %v1564 = vmax.f32 %v1548, 0.0
        %v1565 = vmax.f32 %v1549, 0.0
        %v1566 = vmax.f32 %v1550, 0.0
        %v1567 = vmax.f32 %v1551, 0.0
        %v1568 = vmax.f32 %v1552, 0.0
        %v1569 = vmax.f32 %v1553, 0.0
        %v1570 = vmax.f32 %v1554, 0.0
        %v1571 = vmax.f32 %v1555, 0.0
        %v1572 = vmax.f32 %v1556, 0.0
        %v1573 = vmax.f32 %v1557, 0.0
        %v1574 = vmax.f32 %v1558, 0.0
        %v1575 = vmax.f32 %v1559, 0.0
        %v1576 = vmax.f32 %v1560, 0.0
        %v1577 = vmax.f32 %v1561, 0.0
        %v1578 = vld [vmem:[%s13] sm:$0x1]
        %v1579 = vpack.c.bf16 %v1563, %v1562
        %v1580 = vpack.c.bf16 %v1565, %v1564
        %v1581 = vpack.c.bf16 %v1567, %v1566
        %v1582 = vpack.c.bf16 %v1569, %v1568
        %v1583 = vpack.c.bf16 %v1571, %v1570
        %v1584 = vpack.c.bf16 %v1573, %v1572
        %v1585 = vpack.c.bf16 %v1575, %v1574
        %v1586 = vpack.c.bf16 %v1577, %v1576
        %v1587 = vld [vmem:[#allocation2] sm:$0x1]
        %1589 = vset.pattern.permute.xlu0 0
        %1590 = vperm.xlu0 %1589, %v1587
        %v1591 = vpop.permute.xlu0 %1590
        %v1593 = vlaneseq
        %v1594 = vshrl.u32 %v1593, 7
        %v1595 = vsub.s32 0, %v1594
        %v1596 = vrot.slane %v1591, %v1595
        %vm1597 = vcmask 523264
        %v1599 = vsel %vm1597, %v1578, 0
        %v1602 = vsel %vm1597, %v1579, 0
        %v1605 = vsel %vm1597, %v1580, 0
        %v1608 = vsel %vm1597, %v1581, 0
        %v1611 = vsel %vm1597, %v1582, 0
        %v1614 = vsel %vm1597, %v1583, 0
        %v1617 = vsel %vm1597, %v1584, 0
        %v1620 = vsel %vm1597, %v1585, 0
        %v1623 = vsel %vm1597, %v1586, 0
        %1625 = vmatprep.subr.bf16.mxu0 0
        %1626 = vmatpush1.bf16.xpose.msra.mxu0 %v1602
        %1627 = vmatprep.subr.bf16.mxu0 0
        %1628 = vmatpush1.bf16.xpose.msra.mxu0 %v1605
        %1629 = vmatprep.subr.bf16.mxu0 0
        %1630 = vmatpush1.bf16.xpose.msra.mxu0 %v1608
        %1631 = vmatprep.subr.bf16.mxu0 0
        %1632 = vmatpush1.bf16.xpose.msra.mxu0 %v1611
        %1633 = vmatprep.subr.bf16.mxu0 0
        %1634 = vmatpush1.bf16.xpose.msra.mxu0 %v1614
        %1635 = vmatprep.subr.bf16.mxu0 0
        %1636 = vmatpush1.bf16.xpose.msra.mxu0 %v1617
        %1637 = vmatprep.subr.bf16.mxu0 0
        %1638 = vmatpush1.bf16.xpose.msra.mxu0 %v1620
        %1639 = vmatprep.subr.bf16.mxu0 0
        %1640 = vmatpush1.bf16.xpose.msra.mxu0 %v1623
        %1641 = vmatprep.subr.bf16.mxu0 0
        %1642 = vmatpush1.bf16.xpose.msra.mxu0 0
        %1643 = vmatprep.subr.bf16.mxu0 0
        %1644 = vmatpush1.bf16.xpose.msra.mxu0 0
        %1645 = vmatprep.subr.bf16.mxu0 0
        %1646 = vmatpush1.bf16.xpose.msra.mxu0 0
        %1647 = vmatprep.subr.bf16.mxu0 0
        %1648 = vmatpush1.bf16.xpose.msra.mxu0 0
        %1649 = vmatprep.subr.bf16.mxu0 0
        %1650 = vmatpush1.bf16.xpose.msra.mxu0 0
        %1651 = vmatprep.subr.bf16.mxu0 0
        %1652 = vmatpush1.bf16.xpose.msra.mxu0 0
        %1653 = vmatprep.subr.bf16.mxu0 0
        %1654 = vmatpush1.bf16.xpose.msra.mxu0 0
        %1655 = vmatprep.subr.bf16.mxu0 0
        %1656 = vmatpush1.bf16.xpose.msra.mxu0 0
        %1657 = vmatprep.mubr.bf16.mxu0 0
        %1658 = vmatmul.mubr.bf16.gmra.mrb[0].mxu0 %v1599
        %v1659 = vpop.f32.mrb[0].mxu0
        %v1660 = vadd.f32 %v1596, %v1659
        %v1661 = vpop.f32.mrb[0].mxu0
        %v1662 = vpop.f32.mrb[0].mxu0
        %v1663 = vpop.f32.mrb[0].mxu0
        %1664 = vdwg.mxu0
        %v1665 = vsub.f32 0.0, %v1660
        %v1666 = vmul.f32 %v1665, 1.442695
        %v1667 = vpow.pop %v1666
        %v1668 = vadd.f32 %v1667, 1.0
        %v1669 = vrcp.pop %v1668
        %1670 = vst [vmem:[%s505] sm:$0x1] %v1669
        %s1671 = sand.u32 %s364, 1
        %s1672 = scalar_lea.sflag [#allocation4], %s1671
        %s1673 = sand.u32 %s364, 1
        %s1674 = scalar_lea.vmem [#allocation3], %s1673
        // Predicated region
        $region81: #{two_tower_v2.1} parent=79 // pred_check
          %p1675 = pneg %p374
        $region82: #{two_tower_v2.1} parent=79 // pred_check_branch
          %1677 = sbr.rel (%p1675) target = $region84
        $region83: #{two_tower_v2.1} parent=79 // pred_region
          %s1679 = ssub.s32 16, 16
          %1680 = vsyncadd %s1672, %s1679
          %s1681 = smul.addr %s31, 16
          %s1682 = scalar_lea.hbm %s15, %s1681
          %s1684 = sshll.u32 %s1674, 4
          %s1685 = int_to_ptr.vmem [resolvable:$true] %s1684
          %1687 = dma.vmem_to_hbm [thread:$0]  %s1685, 16, %s1682, %s1672
        $region84: #{two_tower_v2.1} parent=79 // pred_fallthru
          _
      $region80: #{two_tower_v2.1} parent=5 // pred_fallthru
        _
      %p1688 = scmp.le.s32.totalorder 2, %s26
      // Predicated region
      $region85: #{two_tower_v2.1} parent=5 // pred_check
        %p1689 = pneg %p1688
      $region86: #{two_tower_v2.1} parent=5 // pred_check_branch
        %1691 = sbr.rel (%p1689) target = $region88
      $region87: #{two_tower_v2.1} parent=5 // pred_region
        %s1692 = ssub.s32 %s26, 2
        // Predicated region
        $region89: #{two_tower_v2.1} parent=87 // pred_check
          %p1693 = pneg %p380
        $region90: #{two_tower_v2.1} parent=87 // pred_check_branch
          %1695 = sbr.rel (%p1693) target = $region92
        $region91: #{two_tower_v2.1} parent=87 // pred_region
          %s1696 = sand.u32 %s365, 1
          %s1697 = scalar_lea.sflag [#allocation4], %s1696
          %s1698 = sand.u32 %s365, 1
          %s1699 = scalar_lea.vmem [#allocation3], %s1698
          %1700 = dma.done %s1697, 16
        $region92: #{two_tower_v2.1} parent=87 // pred_fallthru
          _
      $region88: #{two_tower_v2.1} parent=5 // pred_fallthru
        _
    $region6: #{two_tower_v2.1} parent=1 // loop_footer
      %s30 = sadd.s32 1, %s26
    $region7: #{two_tower_v2.1} parent=1 // loop_footer_branch
      %25 = sbr.rel target = $region3
    $region8: #{two_tower_v2.1} parent=1 // loop_exit
      _
    %1701 = vsyncpa [#allocation4], 1
    %s1702 = scalar_lea.sflag [#allocation4], 1
    %1703 = vsyncpa %s1702, 1

</llo_original>
